<compile_context>
chip_gen: v7x
topology: tpu7x:2x2x1
jax: 0.10.0
libtpu: 0.0.40
codegen_flags: <defaults>
</compile_context>

<pallas_src>
import math

import jax
import jax.numpy as jnp
import numpy as np
from jax.experimental import pallas as pl
from jax.experimental.pallas import tpu as pltpu

D_MODEL = 32
NHEAD = 4
D_K = D_MODEL // NHEAD
DIM_FF = 64
LN_EPS = 1e-5  # nn.LayerNorm default


def _layer_norm(h, gamma, beta):
    mu = jnp.mean(h, axis=-1, keepdims=True)
    var = jnp.mean((h - mu) ** 2, axis=-1, keepdims=True)
    return (h - mu) * jax.lax.rsqrt(var + LN_EPS) * gamma + beta


def encoder_layer_kernel(x_ref, tw_ref, wqkv_ref, wo_ref, w1_ref, w2_ref, vecs_ref, o_ref):
    L = tw_ref.shape[1]
    xf = x_ref[...].astype(jnp.float32)        # (M, D), M = Bb * L
    M = xf.shape[0]
    Bb = M // L

    tw3 = tw_ref[...].reshape(1, 1, L)         # trapezoidal key weights, broadcast once

    # biases / LayerNorm params, packed row-wise into one (8, 96) array
    bqkv = vecs_ref[0:1, :]                    # (1, 3*D) -- 1/sqrt(d_k) already folded into Q part
    bo = vecs_ref[1:2, :D_MODEL]
    b1 = vecs_ref[2:3, :DIM_FF]
    b2 = vecs_ref[3:4, :D_MODEL]
    g1 = vecs_ref[4:5, :D_MODEL]
    be1 = vecs_ref[5:6, :D_MODEL]
    g2 = vecs_ref[6:7, :D_MODEL]
    be2 = vecs_ref[7:8, :D_MODEL]

    # fused QKV projection on the whole (M, D) slab
    proj = jnp.dot(xf, wqkv_ref[...], preferred_element_type=jnp.float32) + bqkv   # (M, 3*D)

    # --- multi-head trapezoidal-softmax attention, heads folded into the batch dim ---
    # q/k/v for head h occupy batch block [h*Bb, (h+1)*Bb) of a (NHEAD*Bb, L, d_k) tensor;
    # a single einsum / max / exp / sum / einsum chain serves all heads.
    def gather_heads(base):
        return jnp.concatenate(
            [proj[:, base + h * D_K: base + (h + 1) * D_K].reshape(Bb, L, D_K)
             for h in range(NHEAD)],
            axis=0)                                                       # (NHEAD*Bb, L, d_k)

    q_all = gather_heads(0)
    k_all = gather_heads(D_MODEL)
    v_all = gather_heads(2 * D_MODEL)

    s = jnp.einsum("bld,bsd->bls", q_all, k_all,
                   preferred_element_type=jnp.float32)                    # (NHEAD*Bb, L, L)
    m = jnp.max(s, axis=-1, keepdims=True)
    # u = exp(s - m) * tw ; trapezoid softmax @ trapezoid-weighted V == (u @ V) / sum(u)
    u = jnp.exp(s - m) * tw3
    denom = jnp.sum(u, axis=-1, keepdims=True)                            # (NHEAD*Bb, L, 1)
    ov = jnp.einsum("bls,bsd->bld", u, v_all,
                    preferred_element_type=jnp.float32)                   # (NHEAD*Bb, L, d_k)
    o_all = ov * pl.reciprocal(denom, approx=True)

    # combine heads (lane concat, matches PyTorch combine_heads order) -> one K=32 W_o matmul
    o_cat = jnp.concatenate(
        [o_all[h * Bb:(h + 1) * Bb] for h in range(NHEAD)], axis=-1).reshape(M, D_MODEL)
    attn_o = jnp.dot(o_cat, wo_ref[...], preferred_element_type=jnp.float32)       # (M, D)

    # dropout == identity at inference
    h1 = xf + attn_o + bo
    y1 = _layer_norm(h1, g1, be1)

    ff1 = jnp.maximum(jnp.dot(y1, w1_ref[...], preferred_element_type=jnp.float32) + b1, 0.0)
    ff2 = jnp.dot(ff1, w2_ref[...], preferred_element_type=jnp.float32) + b2

    o_ref[...] = _layer_norm(y1 + ff2, g2, be2).astype(o_ref.dtype)


def _device_kind():
    try:
        return jax.devices()[0].device_kind.lower()
    except Exception:
        return ""


def _pick_block_b(B, L, multi_core, max_rows=None):
    """Largest divisor of B whose row slab fits max_rows and is (8,128)-legal.

    Single-TC chips (v5e/v6e): just the biggest legal block (fewer grid steps).
    v7x (2 TensorCores): prefer >=2 grid steps so the 'parallel' axis shards across cores,
    with a smaller per-step footprint for the 64 MiB/TC VMEM.
    """
    if max_rows is None:
        max_rows = 1024 if multi_core else 2048
    divisors = [d for d in range(1, B + 1) if B % d == 0]
    cands = [d for d in divisors if d * L <= max_rows and (d * L) % 8 == 0]
    if not cands:
        # fall back to a single full-array block (always satisfies the tiling rule)
        return B
    if multi_core:
        multi = [d for d in cands if B // d >= 2]
        if multi:
            return max(multi)
    return max(cands)


def transformer_encoder_layer(x, coords_x, p, block_b=None):
    B, L, D = x.shape
    assert D == D_MODEL and coords_x.shape == (L, 1, 1)

    kind = _device_kind()
    multi_core = "v7" in kind
    if block_b is None:
        block_b = _pick_block_b(B, L, multi_core)
    assert B % block_b == 0
    grid_b = B // block_b
    m_blk = block_b * L

    # --- wrapper-side glue (all done once, outside the kernel) ---
    # trapezoidal key weights from coords (coords.shape[1]==1 branch), in float32
    c = coords_x[:, 0, 0].astype(jnp.float32)
    dc = jnp.abs(c[1:] - c[:-1])                                        # (L-1,)
    zero = jnp.zeros((1,), jnp.float32)
    tw = (0.5 * (jnp.concatenate([zero, dc]) + jnp.concatenate([dc, zero]))).reshape(1, L)

    # fold 1/sqrt(d_k) into the Q columns of the fused QKV projection (weights + bias)
    col_scale = jnp.concatenate([
        jnp.full((D_MODEL,), 1.0 / math.sqrt(D_K), jnp.float32),
        jnp.ones((2 * D_MODEL,), jnp.float32)])
    wqkv = p["wqkv"] * col_scale
    bqkv = p["bqkv"] * col_scale

    # pack the 8 tiny bias / LayerNorm vectors into a single (8, 3*D_MODEL) array
    vec_w = 3 * D_MODEL

    def pad_row(v):
        return jnp.pad(v, ((0, 0), (0, vec_w - v.shape[1])))

    vecs = jnp.concatenate(
        [pad_row(bqkv), pad_row(p["bo"]), pad_row(p["b1"]), pad_row(p["b2"]),
         pad_row(p["g1"]), pad_row(p["be1"]), pad_row(p["g2"]), pad_row(p["be2"])], axis=0)

    x_flat = x.reshape(B * L, D)                                        # free reshape in XLA

    def const(shape):
        return pl.BlockSpec(shape, lambda i: (0,) * len(shape))

    vmem_limit = (40 if multi_core else 64) * 1024 * 1024

    out_flat = pl.pallas_call(
        encoder_layer_kernel,
        out_shape=jax.ShapeDtypeStruct((B * L, D), x.dtype),
        grid=(grid_b,),
        in_specs=[
            pl.BlockSpec((m_blk, D), lambda i: (i, 0)),   # x rows for this batch block
            const((1, L)),                                # tw
            const(wqkv.shape),                            # fused QKV weights (scale folded in)
            const(p["wo"].shape),
            const(p["w1"].shape),
            const(p["w2"].shape),
            const(vecs.shape),                            # packed biases / LN params
        ],
        out_specs=pl.BlockSpec((m_blk, D), lambda i: (i, 0)),
        compiler_params=pltpu.CompilerParams(
            dimension_semantics=("parallel",),
            vmem_limit_bytes=vmem_limit),
    )(x_flat, tw, wqkv, p["wo"], p["w1"], p["w2"], vecs)

    return out_flat.reshape(B, L, D)


def init_params(key):
    # Deterministic, PyTorch-nn.Linear-style uniform init. Weights kept as (in, out)
    # so the kernel computes x @ W (== x @ W_pt.T in PyTorch convention).
    ks = jax.random.split(key, 6)

    def lin(k, fan_in, fan_out):
        bound = 1.0 / math.sqrt(fan_in)
        kw, kb = jax.random.split(k)
        w = jax.random.uniform(kw, (fan_in, fan_out), jnp.float32, -bound, bound)
        b = jax.random.uniform(kb, (1, fan_out), jnp.float32, -bound, bound)
        return w, b

    wq, bq = lin(ks[0], D_MODEL, D_MODEL)
    wk, bk = lin(ks[1], D_MODEL, D_MODEL)
    wv, bv = lin(ks[2], D_MODEL, D_MODEL)
    wo, bo = lin(ks[3], D_MODEL, D_MODEL)
    w1, b1 = lin(ks[4], D_MODEL, DIM_FF)
    w2, b2 = lin(ks[5], DIM_FF, D_MODEL)
    return dict(
        wqkv=jnp.concatenate([wq, wk, wv], axis=1),
        bqkv=jnp.concatenate([bq, bk, bv], axis=1),
        wo=wo, bo=bo,
        g1=jnp.ones((1, D_MODEL), jnp.float32), be1=jnp.zeros((1, D_MODEL), jnp.float32),
        w1=w1, b1=b1, w2=w2, b2=b2,
        g2=jnp.ones((1, D_MODEL), jnp.float32), be2=jnp.zeros((1, D_MODEL), jnp.float32),
    )


def reference_forward(x, coords_x, p):
    # Pure-JAX transcription of the PyTorch forward (literal sliced trapezoid formula).
    B, L, D = x.shape
    proj = x @ p["wqkv"] + p["bqkv"]
    q, k, v = jnp.split(proj, 3, axis=-1)

    def split_heads(t):
        return t.reshape(B, L, NHEAD, D_K).transpose(0, 2, 1, 3)

    Q, K, V = split_heads(q), split_heads(k), split_heads(v)
    scores = jnp.einsum("bhld,bhsd->bhls", Q, K) / math.sqrt(D_K)

    c = jnp.abs(coords_x[1:] - coords_x[:-1])            # (L-1,1,1)
    c = jnp.transpose(c, (1, 2, 0))[None]                # (1,1,1,L-1)
    e = jnp.exp(scores - scores.max(-1, keepdims=True))
    denom = (0.5 * c * (e[..., 1:] + e[..., :-1])).sum(-1, keepdims=True)
    attn = e / denom
    cT = jnp.transpose(c, (0, 1, 3, 2))                  # (1,1,L-1,1)
    out1 = jnp.einsum("bhls,bhsd->bhld", attn[..., 1:], cT * V[..., 1:, :])
    out2 = jnp.einsum("bhls,bhsd->bhld", attn[..., :-1], cT * V[..., :-1, :])
    ao = 0.5 * (out1 + out2)
    ao = ao.transpose(0, 2, 1, 3).reshape(B, L, D)
    ao = ao @ p["wo"] + p["bo"]

    def ln(h, g, b):
        mu = h.mean(-1, keepdims=True)
        var = ((h - mu) ** 2).mean(-1, keepdims=True)
        return (h - mu) / jnp.sqrt(var + LN_EPS) * g + b

    x1 = ln(x + ao, p["g1"], p["be1"])
    ff = jnp.maximum(x1 @ p["w1"] + p["b1"], 0.0) @ p["w2"] + p["b2"]
    return ln(x1 + ff, p["g2"], p["be2"])


if __name__ == "__main__":
    B, L = 2, 8
    key = jax.random.PRNGKey(0)
    kx, kc, kp = jax.random.split(key, 3)

    x = jax.random.normal(kx, (B, L, D_MODEL), jnp.float32)
    # monotonically increasing token coordinates, shape (L, 1, 1) -> coords.shape[1]==1 branch
    coords_x = jnp.cumsum(jax.random.uniform(kc, (L, 1, 1), jnp.float32, 0.5, 1.5), axis=0)
    params = init_params(kp)

    out = transformer_encoder_layer(x, coords_x, params)
    out = jax.block_until_ready(out)

    ref = reference_forward(x, coords_x, params)
    np.testing.assert_allclose(np.asarray(out), np.asarray(ref), rtol=2e-3, atol=2e-3)
    print("KERNEL_OK")
</pallas_src>

<mosaic_0001>
module attributes {stable_mosaic.version = 11 : i64} {
  func.func @encoder_layer_kernel(%arg0: i32, %arg1: memref<16x32xf32, #tpu.memory_space<vmem>>, %arg2: memref<1x8xf32, #tpu.memory_space<vmem>>, %arg3: memref<32x96xf32, #tpu.memory_space<vmem>>, %arg4: memref<32x32xf32, #tpu.memory_space<vmem>>, %arg5: memref<32x64xf32, #tpu.memory_space<vmem>>, %arg6: memref<64x32xf32, #tpu.memory_space<vmem>>, %arg7: memref<8x96xf32, #tpu.memory_space<vmem>>, %arg8: memref<16x32xf32, #tpu.memory_space<vmem>>) attributes {dimension_semantics = [#tpu.dimension_semantics<parallel>], iteration_bounds = array<i64: 1>, scalar_prefetch = 0 : i64, scratch_operands = 0 : i64, tpu.core_type = #tpu.core_type<tc>, window_params = [{transform_indices = @transform_0, window_bounds = array<i64: 16, 32>}, {pipeline_mode = #tpu.pipeline_mode<synchronous>, transform_indices = @transform_1, window_bounds = array<i64: 1, 8>}, {pipeline_mode = #tpu.pipeline_mode<synchronous>, transform_indices = @transform_2, window_bounds = array<i64: 32, 96>}, {pipeline_mode = #tpu.pipeline_mode<synchronous>, transform_indices = @transform_3, window_bounds = array<i64: 32, 32>}, {pipeline_mode = #tpu.pipeline_mode<synchronous>, transform_indices = @transform_4, window_bounds = array<i64: 32, 64>}, {pipeline_mode = #tpu.pipeline_mode<synchronous>, transform_indices = @transform_5, window_bounds = array<i64: 64, 32>}, {pipeline_mode = #tpu.pipeline_mode<synchronous>, transform_indices = @transform_6, window_bounds = array<i64: 8, 96>}, {transform_indices = @transform_7, window_bounds = array<i64: 16, 32>}]} {
    %c0 = arith.constant 0 : index
    %c0_0 = arith.constant 0 : index
    %0 = vector.load %arg1[%c0, %c0_0] : memref<16x32xf32, #tpu.memory_space<vmem>>, vector<16x32xf32>
    %c0_1 = arith.constant 0 : index
    %c0_2 = arith.constant 0 : index
    %1 = vector.load %arg2[%c0_1, %c0_2] : memref<1x8xf32, #tpu.memory_space<vmem>>, vector<1x8xf32>
    %2 = vector.shape_cast %1 : vector<1x8xf32> to vector<1x1x8xf32>
    %c0_3 = arith.constant 0 : index
    %c0_4 = arith.constant 0 : index
    %3 = vector.load %arg7[%c0_3, %c0_4] : memref<8x96xf32, #tpu.memory_space<vmem>>, vector<1x96xf32>
    %c1 = arith.constant 1 : index
    %c0_5 = arith.constant 0 : index
    %4 = vector.load %arg7[%c1, %c0_5] : memref<8x96xf32, #tpu.memory_space<vmem>>, vector<1x32xf32>
    %c2 = arith.constant 2 : index
    %c0_6 = arith.constant 0 : index
    %5 = vector.load %arg7[%c2, %c0_6] : memref<8x96xf32, #tpu.memory_space<vmem>>, vector<1x64xf32>
    %c3 = arith.constant 3 : index
    %c0_7 = arith.constant 0 : index
    %6 = vector.load %arg7[%c3, %c0_7] : memref<8x96xf32, #tpu.memory_space<vmem>>, vector<1x32xf32>
    %c4 = arith.constant 4 : index
    %c0_8 = arith.constant 0 : index
    %7 = vector.load %arg7[%c4, %c0_8] : memref<8x96xf32, #tpu.memory_space<vmem>>, vector<1x32xf32>
    %c5 = arith.constant 5 : index
    %c0_9 = arith.constant 0 : index
    %8 = vector.load %arg7[%c5, %c0_9] : memref<8x96xf32, #tpu.memory_space<vmem>>, vector<1x32xf32>
    %c6 = arith.constant 6 : index
    %c0_10 = arith.constant 0 : index
    %9 = vector.load %arg7[%c6, %c0_10] : memref<8x96xf32, #tpu.memory_space<vmem>>, vector<1x32xf32>
    %c7 = arith.constant 7 : index
    %c0_11 = arith.constant 0 : index
    %10 = vector.load %arg7[%c7, %c0_11] : memref<8x96xf32, #tpu.memory_space<vmem>>, vector<1x32xf32>
    %c0_12 = arith.constant 0 : index
    %c0_13 = arith.constant 0 : index
    %11 = vector.load %arg3[%c0_12, %c0_13] : memref<32x96xf32, #tpu.memory_space<vmem>>, vector<32x96xf32>
    %cst = arith.constant dense<0.000000e+00> : vector<16x96xf32>
    %12 = tpu.matmul %0, %11, %cst {dimension_numbers = #tpu.dot_dimension_numbers<[1], [0], [0], [1], [0, 0, 1, 1], [], []>} : vector<16x32xf32>, vector<32x96xf32>, vector<16x96xf32> -> vector<16x96xf32>
    %13 = vector.broadcast %3 : vector<1x96xf32> to vector<16x96xf32>
    %14 = arith.addf %12, %13 : vector<16x96xf32>
    %15 = vector.extract_strided_slice %14 {offsets = [0, 0], sizes = [16, 8], strides = [1, 1]} : vector<16x96xf32> to vector<16x8xf32>
    %16 = vector.shape_cast %15 : vector<16x8xf32> to vector<2x8x8xf32>
    %17 = vector.extract_strided_slice %14 {offsets = [0, 8], sizes = [16, 8], strides = [1, 1]} : vector<16x96xf32> to vector<16x8xf32>
    %18 = vector.shape_cast %17 : vector<16x8xf32> to vector<2x8x8xf32>
    %19 = vector.extract_strided_slice %14 {offsets = [0, 16], sizes = [16, 8], strides = [1, 1]} : vector<16x96xf32> to vector<16x8xf32>
    %20 = vector.shape_cast %19 : vector<16x8xf32> to vector<2x8x8xf32>
    %21 = vector.extract_strided_slice %14 {offsets = [0, 24], sizes = [16, 8], strides = [1, 1]} : vector<16x96xf32> to vector<16x8xf32>
    %22 = vector.shape_cast %21 : vector<16x8xf32> to vector<2x8x8xf32>
    %23 = tpu.concatenate %16, %18, %20, %22 in 0 : vector<2x8x8xf32>, vector<2x8x8xf32>, vector<2x8x8xf32>, vector<2x8x8xf32> -> vector<8x8x8xf32>
    %24 = vector.extract_strided_slice %14 {offsets = [0, 32], sizes = [16, 8], strides = [1, 1]} : vector<16x96xf32> to vector<16x8xf32>
    %25 = vector.shape_cast %24 : vector<16x8xf32> to vector<2x8x8xf32>
    %26 = vector.extract_strided_slice %14 {offsets = [0, 40], sizes = [16, 8], strides = [1, 1]} : vector<16x96xf32> to vector<16x8xf32>
    %27 = vector.shape_cast %26 : vector<16x8xf32> to vector<2x8x8xf32>
    %28 = vector.extract_strided_slice %14 {offsets = [0, 48], sizes = [16, 8], strides = [1, 1]} : vector<16x96xf32> to vector<16x8xf32>
    %29 = vector.shape_cast %28 : vector<16x8xf32> to vector<2x8x8xf32>
    %30 = vector.extract_strided_slice %14 {offsets = [0, 56], sizes = [16, 8], strides = [1, 1]} : vector<16x96xf32> to vector<16x8xf32>
    %31 = vector.shape_cast %30 : vector<16x8xf32> to vector<2x8x8xf32>
    %32 = tpu.concatenate %25, %27, %29, %31 in 0 : vector<2x8x8xf32>, vector<2x8x8xf32>, vector<2x8x8xf32>, vector<2x8x8xf32> -> vector<8x8x8xf32>
    %33 = vector.extract_strided_slice %14 {offsets = [0, 64], sizes = [16, 8], strides = [1, 1]} : vector<16x96xf32> to vector<16x8xf32>
    %34 = vector.shape_cast %33 : vector<16x8xf32> to vector<2x8x8xf32>
    %35 = vector.extract_strided_slice %14 {offsets = [0, 72], sizes = [16, 8], strides = [1, 1]} : vector<16x96xf32> to vector<16x8xf32>
    %36 = vector.shape_cast %35 : vector<16x8xf32> to vector<2x8x8xf32>
    %37 = vector.extract_strided_slice %14 {offsets = [0, 80], sizes = [16, 8], strides = [1, 1]} : vector<16x96xf32> to vector<16x8xf32>
    %38 = vector.shape_cast %37 : vector<16x8xf32> to vector<2x8x8xf32>
    %39 = vector.extract_strided_slice %14 {offsets = [0, 88], sizes = [16, 8], strides = [1, 1]} : vector<16x96xf32> to vector<16x8xf32>
    %40 = vector.shape_cast %39 : vector<16x8xf32> to vector<2x8x8xf32>
    %41 = tpu.concatenate %34, %36, %38, %40 in 0 : vector<2x8x8xf32>, vector<2x8x8xf32>, vector<2x8x8xf32>, vector<2x8x8xf32> -> vector<8x8x8xf32>
    "tpu.trace_start"() <{level = 10 : i32, message = "bld,bsd->bls"}> : () -> ()
    %cst_14 = arith.constant dense<0.000000e+00> : vector<8x8x8xf32>
    %42 = tpu.matmul %23, %32, %cst_14 {dimension_numbers = #tpu.dot_dimension_numbers<[2], [2], [1], [1], [0, 0, 0, 1, 1, 1], [0], [0]>} : vector<8x8x8xf32>, vector<8x8x8xf32>, vector<8x8x8xf32> -> vector<8x8x8xf32>
    "tpu.trace_stop"() : () -> ()
    %cst_15 = arith.constant dense<0xFF800000> : vector<8x8xf32>
    %43 = vector.multi_reduction <maximumf>, %42, %cst_15 [2] : vector<8x8x8xf32> to vector<8x8xf32>
    %44 = vector.shape_cast %43 : vector<8x8xf32> to vector<8x8x1xf32>
    %45 = vector.broadcast %44 : vector<8x8x1xf32> to vector<8x8x8xf32>
    %46 = arith.subf %42, %45 : vector<8x8x8xf32>
    %47 = math.exp %46 : vector<8x8x8xf32>
    %48 = vector.broadcast %2 : vector<1x1x8xf32> to vector<8x8x8xf32>
    %49 = arith.mulf %47, %48 : vector<8x8x8xf32>
    %cst_16 = arith.constant dense<0.000000e+00> : vector<8x8xf32>
    %50 = vector.multi_reduction <add>, %49, %cst_16 [2] : vector<8x8x8xf32> to vector<8x8xf32>
    %51 = vector.shape_cast %50 : vector<8x8xf32> to vector<8x8x1xf32>
    "tpu.trace_start"() <{level = 10 : i32, message = "bls,bsd->bld"}> : () -> ()
    %cst_17 = arith.constant dense<0.000000e+00> : vector<8x8x8xf32>
    %52 = tpu.matmul %49, %41, %cst_17 {dimension_numbers = #tpu.dot_dimension_numbers<[2], [1], [1], [2], [0, 0, 0, 1, 1, 2], [0], [0]>} : vector<8x8x8xf32>, vector<8x8x8xf32>, vector<8x8x8xf32> -> vector<8x8x8xf32>
    "tpu.trace_stop"() : () -> ()
    %53 = tpu.reciprocal %51 {approx = true} : vector<8x8x1xf32> -> vector<8x8x1xf32>
    %54 = vector.broadcast %53 : vector<8x8x1xf32> to vector<8x8x8xf32>
    %55 = arith.mulf %52, %54 : vector<8x8x8xf32>
    %56 = vector.extract_strided_slice %55 {offsets = [0, 0, 0], sizes = [2, 8, 8], strides = [1, 1, 1]} : vector<8x8x8xf32> to vector<2x8x8xf32>
    %57 = vector.extract_strided_slice %55 {offsets = [2, 0, 0], sizes = [2, 8, 8], strides = [1, 1, 1]} : vector<8x8x8xf32> to vector<2x8x8xf32>
    %58 = vector.extract_strided_slice %55 {offsets = [4, 0, 0], sizes = [2, 8, 8], strides = [1, 1, 1]} : vector<8x8x8xf32> to vector<2x8x8xf32>
    %59 = vector.extract_strided_slice %55 {offsets = [6, 0, 0], sizes = [2, 8, 8], strides = [1, 1, 1]} : vector<8x8x8xf32> to vector<2x8x8xf32>
    %60 = tpu.concatenate %56, %57, %58, %59 in 2 : vector<2x8x8xf32>, vector<2x8x8xf32>, vector<2x8x8xf32>, vector<2x8x8xf32> -> vector<2x8x32xf32>
    %61 = vector.shape_cast %60 : vector<2x8x32xf32> to vector<16x32xf32>
    %c0_18 = arith.constant 0 : index
    %c0_19 = arith.constant 0 : index
    %62 = vector.load %arg4[%c0_18, %c0_19] : memref<32x32xf32, #tpu.memory_space<vmem>>, vector<32x32xf32>
    %cst_20 = arith.constant dense<0.000000e+00> : vector<16x32xf32>
    %63 = tpu.matmul %61, %62, %cst_20 {dimension_numbers = #tpu.dot_dimension_numbers<[1], [0], [0], [1], [0, 0, 1, 1], [], []>} : vector<16x32xf32>, vector<32x32xf32>, vector<16x32xf32> -> vector<16x32xf32>
    %64 = arith.addf %0, %63 : vector<16x32xf32>
    %65 = vector.broadcast %4 : vector<1x32xf32> to vector<16x32xf32>
    %66 = arith.addf %64, %65 : vector<16x32xf32>
    %cst_21 = arith.constant dense<0.000000e+00> : vector<16xf32>
    %67 = vector.multi_reduction <add>, %66, %cst_21 [1] : vector<16x32xf32> to vector<16xf32>
    %68 = vector.shape_cast %67 : vector<16xf32> to vector<16x1xf32>
    %cst_22 = arith.constant 3.200000e+01 : f32
    %69 = vector.broadcast %cst_22 : f32 to vector<16x1xf32>
    %70 = arith.divf %68, %69 : vector<16x1xf32>
    %71 = vector.broadcast %70 : vector<16x1xf32> to vector<16x32xf32>
    %72 = arith.subf %66, %71 : vector<16x32xf32>
    %73 = arith.mulf %72, %72 : vector<16x32xf32>
    %cst_23 = arith.constant dense<0.000000e+00> : vector<16xf32>
    %74 = vector.multi_reduction <add>, %73, %cst_23 [1] : vector<16x32xf32> to vector<16xf32>
    %75 = vector.shape_cast %74 : vector<16xf32> to vector<16x1xf32>
    %cst_24 = arith.constant 3.200000e+01 : f32
    %76 = vector.broadcast %cst_24 : f32 to vector<16x1xf32>
    %77 = arith.divf %75, %76 : vector<16x1xf32>
    %78 = vector.broadcast %70 : vector<16x1xf32> to vector<16x32xf32>
    %79 = arith.subf %66, %78 : vector<16x32xf32>
    %cst_25 = arith.constant 9.99999974E-6 : f32
    %80 = vector.broadcast %cst_25 : f32 to vector<16x1xf32>
    %81 = arith.addf %77, %80 : vector<16x1xf32>
    %82 = math.rsqrt %81 : vector<16x1xf32>
    %83 = vector.broadcast %82 : vector<16x1xf32> to vector<16x32xf32>
    %84 = arith.mulf %79, %83 : vector<16x32xf32>
    %85 = vector.broadcast %7 : vector<1x32xf32> to vector<16x32xf32>
    %86 = arith.mulf %84, %85 : vector<16x32xf32>
    %87 = vector.broadcast %8 : vector<1x32xf32> to vector<16x32xf32>
    %88 = arith.addf %86, %87 : vector<16x32xf32>
    %c0_26 = arith.constant 0 : index
    %c0_27 = arith.constant 0 : index
    %89 = vector.load %arg5[%c0_26, %c0_27] : memref<32x64xf32, #tpu.memory_space<vmem>>, vector<32x64xf32>
    %cst_28 = arith.constant dense<0.000000e+00> : vector<16x64xf32>
    %90 = tpu.matmul %88, %89, %cst_28 {dimension_numbers = #tpu.dot_dimension_numbers<[1], [0], [0], [1], [0, 0, 1, 1], [], []>} : vector<16x32xf32>, vector<32x64xf32>, vector<16x64xf32> -> vector<16x64xf32>
    %91 = vector.broadcast %5 : vector<1x64xf32> to vector<16x64xf32>
    %92 = arith.addf %90, %91 : vector<16x64xf32>
    %cst_29 = arith.constant 0.000000e+00 : f32
    %93 = vector.broadcast %cst_29 : f32 to vector<16x64xf32>
    %94 = arith.maximumf %92, %93 : vector<16x64xf32>
    %c0_30 = arith.constant 0 : index
    %c0_31 = arith.constant 0 : index
    %95 = vector.load %arg6[%c0_30, %c0_31] : memref<64x32xf32, #tpu.memory_space<vmem>>, vector<64x32xf32>
    %cst_32 = arith.constant dense<0.000000e+00> : vector<16x32xf32>
    %96 = tpu.matmul %94, %95, %cst_32 {dimension_numbers = #tpu.dot_dimension_numbers<[1], [0], [0], [1], [0, 0, 1, 1], [], []>} : vector<16x64xf32>, vector<64x32xf32>, vector<16x32xf32> -> vector<16x32xf32>
    %97 = vector.broadcast %6 : vector<1x32xf32> to vector<16x32xf32>
    %98 = arith.addf %96, %97 : vector<16x32xf32>
    %99 = arith.addf %88, %98 : vector<16x32xf32>
    %cst_33 = arith.constant dense<0.000000e+00> : vector<16xf32>
    %100 = vector.multi_reduction <add>, %99, %cst_33 [1] : vector<16x32xf32> to vector<16xf32>
    %101 = vector.shape_cast %100 : vector<16xf32> to vector<16x1xf32>
    %cst_34 = arith.constant 3.200000e+01 : f32
    %102 = vector.broadcast %cst_34 : f32 to vector<16x1xf32>
    %103 = arith.divf %101, %102 : vector<16x1xf32>
    %104 = vector.broadcast %103 : vector<16x1xf32> to vector<16x32xf32>
    %105 = arith.subf %99, %104 : vector<16x32xf32>
    %106 = arith.mulf %105, %105 : vector<16x32xf32>
    %cst_35 = arith.constant dense<0.000000e+00> : vector<16xf32>
    %107 = vector.multi_reduction <add>, %106, %cst_35 [1] : vector<16x32xf32> to vector<16xf32>
    %108 = vector.shape_cast %107 : vector<16xf32> to vector<16x1xf32>
    %cst_36 = arith.constant 3.200000e+01 : f32
    %109 = vector.broadcast %cst_36 : f32 to vector<16x1xf32>
    %110 = arith.divf %108, %109 : vector<16x1xf32>
    %111 = vector.broadcast %103 : vector<16x1xf32> to vector<16x32xf32>
    %112 = arith.subf %99, %111 : vector<16x32xf32>
    %cst_37 = arith.constant 9.99999974E-6 : f32
    %113 = vector.broadcast %cst_37 : f32 to vector<16x1xf32>
    %114 = arith.addf %110, %113 : vector<16x1xf32>
    %115 = math.rsqrt %114 : vector<16x1xf32>
    %116 = vector.broadcast %115 : vector<16x1xf32> to vector<16x32xf32>
    %117 = arith.mulf %112, %116 : vector<16x32xf32>
    %118 = vector.broadcast %9 : vector<1x32xf32> to vector<16x32xf32>
    %119 = arith.mulf %117, %118 : vector<16x32xf32>
    %120 = vector.broadcast %10 : vector<1x32xf32> to vector<16x32xf32>
    %121 = arith.addf %119, %120 : vector<16x32xf32>
    %c0_38 = arith.constant 0 : index
    %c0_39 = arith.constant 0 : index
    %122 = vector.load %arg8[%c0_38, %c0_39] : memref<16x32xf32, #tpu.memory_space<vmem>>, vector<16x32xf32>
    tpu.vector_store %arg8[%c0_38, %c0_39], %121 {strides = array<i32>} : memref<16x32xf32, #tpu.memory_space<vmem>>, vector<16x32xf32>,
    return
  }
  func.func @transform_0(%arg0: i32) -> (i32, i32) {
    %c0_i32 = arith.constant 0 : i32
    %c0_i32_0 = arith.constant 0 : i32
    return %arg0, %c0_i32 : i32, i32
  }
  func.func @transform_1(%arg0: i32) -> (i32, i32) {
    %c0_i32 = arith.constant 0 : i32
    %c0_i32_0 = arith.constant 0 : i32
    %c0_i32_1 = arith.constant 0 : i32
    return %c0_i32, %c0_i32_0 : i32, i32
  }
  func.func @transform_2(%arg0: i32) -> (i32, i32) {
    %c0_i32 = arith.constant 0 : i32
    %c0_i32_0 = arith.constant 0 : i32
    %c0_i32_1 = arith.constant 0 : i32
    return %c0_i32, %c0_i32_0 : i32, i32
  }
  func.func @transform_3(%arg0: i32) -> (i32, i32) {
    %c0_i32 = arith.constant 0 : i32
    %c0_i32_0 = arith.constant 0 : i32
    %c0_i32_1 = arith.constant 0 : i32
    return %c0_i32, %c0_i32_0 : i32, i32
  }
  func.func @transform_4(%arg0: i32) -> (i32, i32) {
    %c0_i32 = arith.constant 0 : i32
    %c0_i32_0 = arith.constant 0 : i32
    %c0_i32_1 = arith.constant 0 : i32
    return %c0_i32, %c0_i32_0 : i32, i32
  }
  func.func @transform_5(%arg0: i32) -> (i32, i32) {
    %c0_i32 = arith.constant 0 : i32
    %c0_i32_0 = arith.constant 0 : i32
    %c0_i32_1 = arith.constant 0 : i32
    return %c0_i32, %c0_i32_0 : i32, i32
  }
  func.func @transform_6(%arg0: i32) -> (i32, i32) {
    %c0_i32 = arith.constant 0 : i32
    %c0_i32_0 = arith.constant 0 : i32
    %c0_i32_1 = arith.constant 0 : i32
    return %c0_i32, %c0_i32_0 : i32, i32
  }
  func.func @transform_7(%arg0: i32) -> (i32, i32) {
    %c0_i32 = arith.constant 0 : i32
    %c0_i32_0 = arith.constant 0 : i32
    return %arg0, %c0_i32 : i32, i32
  }
}

</mosaic_0001>

<llo_original>
// kernel: tpu_custom_call.1
$region0: #{tpu_custom_call.1}
  #allocation0 [shape = 'u32[]', space=smem, size = 0x4, offset = 0x4, fixed_abs, tag = 'smem constant byte address 0x4 - core index']
  #allocation1 [shape = 'u32[144,128]{1,0:T(1,128)}', space=vmem, size = 0x12000, scoped, tag = 'internal scratch']
  %s0 = inlined_call_operand.hbm [shape: f32[16,32], index: 0, kind: input, shape index: {}]
  %s1 = inlined_call_operand.hbm [shape: f32[1,8], index: 1, kind: input, shape index: {}]
  %s2 = inlined_call_operand.hbm [shape: f32[32,96], index: 2, kind: input, shape index: {}]
  %s3 = inlined_call_operand.hbm [shape: f32[32,32], index: 3, kind: input, shape index: {}]
  %s4 = inlined_call_operand.hbm [shape: f32[32,64], index: 4, kind: input, shape index: {}]
  %s5 = inlined_call_operand.hbm [shape: f32[64,32], index: 5, kind: input, shape index: {}]
  %s6 = inlined_call_operand.hbm [shape: f32[8,96], index: 6, kind: input, shape index: {}]
  %s7 = inlined_call_operand.hbm [shape: f32[16,32], index: 7, kind: output, shape index: {}]
  %s8 = sld [smem:[#allocation0]]
  $region66: #{tpu_custom_call.1} parent=0
    _
  %s10 = ssub.s32 1, %s8
  %s11 = scalar_select 0, %s10, %s8
  $region1: #{tpu_custom_call.1} parent=0
    #allocation2 [shape = 'u8[8192]{0}', space=vmem, size = 0x2000, scoped, tag = 'input window, operand 0, single buffered']
    #allocation3 [shape = 's32[1]{0}', space=sflag, size = 0x4, scoped, tag = 'scoped memory for tpu_custom_call.1']
    #allocation4 [shape = 's32[1]{0}', space=sflag, size = 0x4, scoped, tag = 'scoped memory for tpu_custom_call.1']
    #allocation5 [shape = 'u8[512]{0}', space=vmem, size = 0x400, scoped, tag = 'input window, operand 1, single buffered']
    #allocation6 [shape = 's32[1]{0}', space=sflag, size = 0x4, scoped, tag = 'scoped memory for tpu_custom_call.1']
    #allocation7 [shape = 'u8[16384]{0}', space=vmem, size = 0x4000, scoped, tag = 'input window, operand 2, single buffered']
    #allocation8 [shape = 'u8[16384]{0}', space=vmem, size = 0x4000, scoped, tag = 'input window, operand 3, single buffered']
    #allocation9 [shape = 's32[1]{0}', space=sflag, size = 0x4, scoped, tag = 'scoped memory for tpu_custom_call.1']
    #allocation10 [shape = 'u8[16384]{0}', space=vmem, size = 0x4000, scoped, tag = 'input window, operand 4, single buffered']
    #allocation11 [shape = 'u8[32768]{0}', space=vmem, size = 0x8000, scoped, tag = 'input window, operand 5, single buffered']
    #allocation12 [shape = 's32[1]{0}', space=sflag, size = 0x4, scoped, tag = 'scoped memory for tpu_custom_call.1']
    #allocation13 [shape = 'u8[4096]{0}', space=vmem, size = 0x1000, scoped, tag = 'input window, operand 6, single buffered']
    #allocation14 [shape = 'u8[8192]{0}', space=vmem, size = 0x2000, scoped, tag = 'output window, operand 0, single buffered']
    %12 = vsyncpa [#allocation3], 0
    %13 = vsyncpa [#allocation6], 0
    %14 = vsyncpa [#allocation9], 0
    %15 = vsyncpa [#allocation12], 0
    %16 = vsyncpa [#allocation4], 0
    // Predicated region
    $region2: #{tpu_custom_call.1} parent=1 // pred_check
      _
    $region3: #{tpu_custom_call.1} parent=1 // pred_check_branch
      %18 = sbr.rel (0) target = $region5
    $region4: #{tpu_custom_call.1} parent=1 // pred_region
      %s20 = ssub.s32 256, 256
      %21 = vsyncadd [#allocation3], %s20
      %s22 = sshll.u32 [#allocation2], 4
      %s23 = int_to_ptr.vmem [resolvable:$true] %s22
      %28 = dma.hbm_to_vmem [thread:$0]  %s0, 256, %s23, [#allocation3], 128, 128, 8
    $region5: #{tpu_custom_call.1} parent=1 // pred_fallthru
      _
    // Predicated region
    $region6: #{tpu_custom_call.1} parent=1 // pred_check
      _
    $region7: #{tpu_custom_call.1} parent=1 // pred_check_branch
      %30 = sbr.rel (0) target = $region9
    $region8: #{tpu_custom_call.1} parent=1 // pred_region
      %s32 = ssub.s32 16, 16
      %33 = vsyncadd [#allocation6], %s32
      %s35 = sshll.u32 [#allocation5], 4
      %s36 = int_to_ptr.vmem [resolvable:$true] %s35
      %38 = dma.hbm_to_vmem [thread:$0]  %s1, 16, %s36, [#allocation6]
    $region9: #{tpu_custom_call.1} parent=1 // pred_fallthru
      _
    // Predicated region
    $region10: #{tpu_custom_call.1} parent=1 // pred_check
      _
    $region11: #{tpu_custom_call.1} parent=1 // pred_check_branch
      %40 = sbr.rel (0) target = $region13
    $region12: #{tpu_custom_call.1} parent=1 // pred_region
      %s42 = ssub.s32 512, 512
      %43 = vsyncadd [#allocation6], %s42
      %s44 = sshll.u32 [#allocation7], 4
      %s45 = int_to_ptr.vmem [resolvable:$true] %s44
      %50 = dma.hbm_to_vmem [thread:$0]  %s2, 512, %s45, [#allocation6], 128, 128, 8
    $region13: #{tpu_custom_call.1} parent=1 // pred_fallthru
      _
    // Predicated region
    $region14: #{tpu_custom_call.1} parent=1 // pred_check
      _
    $region15: #{tpu_custom_call.1} parent=1 // pred_check_branch
      %52 = sbr.rel (0) target = $region17
    $region16: #{tpu_custom_call.1} parent=1 // pred_region
      %s54 = ssub.s32 512, 512
      %55 = vsyncadd [#allocation9], %s54
      %s56 = sshll.u32 [#allocation8], 4
      %s57 = int_to_ptr.vmem [resolvable:$true] %s56
      %62 = dma.hbm_to_vmem [thread:$0]  %s3, 512, %s57, [#allocation9], 128, 128, 8
    $region17: #{tpu_custom_call.1} parent=1 // pred_fallthru
      _
    // Predicated region
    $region18: #{tpu_custom_call.1} parent=1 // pred_check
      _
    $region19: #{tpu_custom_call.1} parent=1 // pred_check_branch
      %64 = sbr.rel (0) target = $region21
    $region20: #{tpu_custom_call.1} parent=1 // pred_region
      %s66 = ssub.s32 512, 512
      %67 = vsyncadd [#allocation9], %s66
      %s68 = sshll.u32 [#allocation10], 4
      %s69 = int_to_ptr.vmem [resolvable:$true] %s68
      %74 = dma.hbm_to_vmem [thread:$0]  %s4, 512, %s69, [#allocation9], 128, 128, 8
    $region21: #{tpu_custom_call.1} parent=1 // pred_fallthru
      _
    // Predicated region
    $region22: #{tpu_custom_call.1} parent=1 // pred_check
      _
    $region23: #{tpu_custom_call.1} parent=1 // pred_check_branch
      %76 = sbr.rel (0) target = $region25
    $region24: #{tpu_custom_call.1} parent=1 // pred_region
      %s78 = ssub.s32 1024, 1024
      %79 = vsyncadd [#allocation12], %s78
      %s80 = sshll.u32 [#allocation11], 4
      %s81 = int_to_ptr.vmem [resolvable:$true] %s80
      %86 = dma.hbm_to_vmem [thread:$0]  %s5, 1024, %s81, [#allocation12], 128, 128, 8
    $region25: #{tpu_custom_call.1} parent=1 // pred_fallthru
      _
    // Predicated region
    $region26: #{tpu_custom_call.1} parent=1 // pred_check
      _
    $region27: #{tpu_custom_call.1} parent=1 // pred_check_branch
      %88 = sbr.rel (0) target = $region29
    $region28: #{tpu_custom_call.1} parent=1 // pred_region
      %s90 = ssub.s32 128, 128
      %91 = vsyncadd [#allocation12], %s90
      %s93 = sshll.u32 [#allocation13], 4
      %s94 = int_to_ptr.vmem [resolvable:$true] %s93
      %96 = dma.hbm_to_vmem [thread:$0]  %s6, 128, %s94, [#allocation12]
    $region29: #{tpu_custom_call.1} parent=1 // pred_fallthru
      _
    // Predicated region
    $region30: #{tpu_custom_call.1} parent=1 // pred_check
      _
    $region31: #{tpu_custom_call.1} parent=1 // pred_check_branch
      %98 = sbr.rel (0) target = $region33
    $region32: #{tpu_custom_call.1} parent=1 // pred_region
      %99 = dma.done [#allocation3], 256
    $region33: #{tpu_custom_call.1} parent=1 // pred_fallthru
      _
    // Predicated region
    $region34: #{tpu_custom_call.1} parent=1 // pred_check
      _
    $region35: #{tpu_custom_call.1} parent=1 // pred_check_branch
      %101 = sbr.rel (0) target = $region37
    $region36: #{tpu_custom_call.1} parent=1 // pred_region
      %102 = dma.done [#allocation6], 16
    $region37: #{tpu_custom_call.1} parent=1 // pred_fallthru
      _
    // Predicated region
    $region38: #{tpu_custom_call.1} parent=1 // pred_check
      _
    $region39: #{tpu_custom_call.1} parent=1 // pred_check_branch
      %104 = sbr.rel (0) target = $region41
    $region40: #{tpu_custom_call.1} parent=1 // pred_region
      %105 = dma.done [#allocation6], 512
    $region41: #{tpu_custom_call.1} parent=1 // pred_fallthru
      _
    // Predicated region
    $region42: #{tpu_custom_call.1} parent=1 // pred_check
      _
    $region43: #{tpu_custom_call.1} parent=1 // pred_check_branch
      %107 = sbr.rel (0) target = $region45
    $region44: #{tpu_custom_call.1} parent=1 // pred_region
      %108 = dma.done [#allocation9], 512
    $region45: #{tpu_custom_call.1} parent=1 // pred_fallthru
      _
    // Predicated region
    $region46: #{tpu_custom_call.1} parent=1 // pred_check
      _
    $region47: #{tpu_custom_call.1} parent=1 // pred_check_branch
      %110 = sbr.rel (0) target = $region49
    $region48: #{tpu_custom_call.1} parent=1 // pred_region
      %111 = dma.done [#allocation9], 512
    $region49: #{tpu_custom_call.1} parent=1 // pred_fallthru
      _
    // Predicated region
    $region50: #{tpu_custom_call.1} parent=1 // pred_check
      _
    $region51: #{tpu_custom_call.1} parent=1 // pred_check_branch
      %113 = sbr.rel (0) target = $region53
    $region52: #{tpu_custom_call.1} parent=1 // pred_region
      %114 = dma.done [#allocation12], 1024
    $region53: #{tpu_custom_call.1} parent=1 // pred_fallthru
      _
    // Predicated region
    $region54: #{tpu_custom_call.1} parent=1 // pred_check
      _
    $region55: #{tpu_custom_call.1} parent=1 // pred_check_branch
      %116 = sbr.rel (0) target = $region57
    $region56: #{tpu_custom_call.1} parent=1 // pred_region
      %117 = dma.done [#allocation12], 128
    $region57: #{tpu_custom_call.1} parent=1 // pred_fallthru
      _
    %v118 = vld [vmem:[#allocation2] sm:$0xff]
    %v119 = vld [vmem:[#allocation2 + $0x8] sm:$0xff]
    %v120 = vld [vmem:[#allocation5] sm:$0x1]
    %v121 = vld [vmem:[#allocation13] sm:$0x1]
    %v122 = vld [vmem:[#allocation13 + $0x1] sm:$0x1]
    %v123 = vld [vmem:[#allocation13 + $0x2] sm:$0x1]
    %v124 = vld [vmem:[#allocation13 + $0x3] sm:$0x1]
    %v125 = vld [vmem:[#allocation13 + $0x4] sm:$0x1]
    %v126 = vld [vmem:[#allocation13 + $0x5] sm:$0x1]
    %v127 = vld [vmem:[#allocation13 + $0x6] sm:$0x1]
    %v128 = vld [vmem:[#allocation13 + $0x7] sm:$0x1]
    %v129 = vld [vmem:[#allocation7] sm:$0xff]
    %v130 = vld [vmem:[#allocation7 + $0x8] sm:$0xff]
    %v131 = vld [vmem:[#allocation7 + $0x10] sm:$0xff]
    %v132 = vld [vmem:[#allocation7 + $0x18] sm:$0xff]
    %v133 = vlaneseq
    %v134 = vshrl.u32 %v133, 7
    %v135 = vsub.s32 0, %v134
    %v136 = vrot.slane %v121, %v135
    %vm137 = vcmask 261120
    %v139 = vsel %vm137, %v118, 0
    %v142 = vsel %vm137, %v119, 0
    %144 = vmatprep.subr.mxu0 0.0
    %145 = vmatpush1.msra.mxu0 %v129
    %146 = vmatprep.subr.mxu0 0.0
    %147 = vmatpush1.msra.mxu0 %v130
    %148 = vmatprep.subr.mxu0 0.0
    %149 = vmatpush1.msra.mxu0 %v131
    %150 = vmatprep.subr.mxu0 0.0
    %151 = vmatpush1.msra.mxu0 %v132
    %152 = vmatprep.subr.mxu0 0.0
    %153 = vmatpush1.msra.mxu0 0.0
    %154 = vmatprep.subr.mxu0 0.0
    %155 = vmatpush1.msra.mxu0 0.0
    %156 = vmatprep.subr.mxu0 0.0
    %157 = vmatpush1.msra.mxu0 0.0
    %158 = vmatprep.subr.mxu0 0.0
    %159 = vmatpush1.msra.mxu0 0.0
    %160 = vmatprep.subr.mxu0 0.0
    %161 = vmatpush1.msra.mxu0 0.0
    %162 = vmatprep.subr.mxu0 0.0
    %163 = vmatpush1.msra.mxu0 0.0
    %164 = vmatprep.subr.mxu0 0.0
    %165 = vmatpush1.msra.mxu0 0.0
    %166 = vmatprep.subr.mxu0 0.0
    %167 = vmatpush1.msra.mxu0 0.0
    %168 = vmatprep.subr.mxu0 0.0
    %169 = vmatpush1.msra.mxu0 0.0
    %170 = vmatprep.subr.mxu0 0.0
    %171 = vmatpush1.msra.mxu0 0.0
    %172 = vmatprep.subr.mxu0 0.0
    %173 = vmatpush1.msra.mxu0 0.0
    %174 = vmatprep.subr.mxu0 0.0
    %175 = vmatpush1.msra.mxu0 0.0
    %176 = vmatprep.subr.mxu0 0.0
    %177 = vmatpush1.msra.mxu0 0.0
    %178 = vmatprep.subr.mxu0 0.0
    %179 = vmatpush1.msra.mxu0 0.0
    %180 = vmatprep.subr.mxu0 0.0
    %181 = vmatpush1.msra.mxu0 0.0
    %182 = vmatprep.subr.mxu0 0.0
    %183 = vmatpush1.msra.mxu0 0.0
    %184 = vmatprep.subr.mxu0 0.0
    %185 = vmatpush1.msra.mxu0 0.0
    %186 = vmatprep.subr.mxu0 0.0
    %187 = vmatpush1.msra.mxu0 0.0
    %188 = vmatprep.subr.mxu0 0.0
    %189 = vmatpush1.msra.mxu0 0.0
    %190 = vmatprep.subr.mxu0 0.0
    %191 = vmatpush1.msra.mxu0 0.0
    %192 = vmatprep.subr.mxu0 0.0
    %193 = vmatpush1.msra.mxu0 0.0
    %194 = vmatprep.subr.mxu0 0.0
    %195 = vmatpush1.msra.mxu0 0.0
    %196 = vmatprep.subr.mxu0 0.0
    %197 = vmatpush1.msra.mxu0 0.0
    %198 = vmatprep.subr.mxu0 0.0
    %199 = vmatpush1.msra.mxu0 0.0
    %200 = vmatprep.subr.mxu0 0.0
    %201 = vmatpush1.msra.mxu0 0.0
    %202 = vmatprep.subr.mxu0 0.0
    %203 = vmatpush1.msra.mxu0 0.0
    %204 = vmatprep.subr.mxu0 0.0
    %205 = vmatpush1.msra.mxu0 0.0
    %206 = vmatprep.subr.mxu0 0.0
    %207 = vmatpush1.msra.mxu0 0.0
    %208 = vmatprep.mubr.f32.mxu0 0.0
    %209 = vmatmul.mubr.f32.gmra.mrb[0].mxu0 %v139
    %v210 = vpop.f32.mrb[0].mxu0
    %v211 = vadd.f32 %v136, %v210
    %v212 = vpop.f32.mrb[0].mxu0
    %213 = vmatprep.mubr.f32.mxu0 0.0
    %214 = vmatmul.mubr.f32.gmra.mrb[0].mxu0 %v142
    %v215 = vpop.f32.mrb[0].mxu0
    %v216 = vadd.f32 %v136, %v215
    %v217 = vpop.f32.mrb[0].mxu0
    %218 = vdwg.mxu0
    %221 = vrot.lane.b32.xlu0 %v211, 120
    %v222 = vpop.permute.xlu0 %221
    %223 = vrot.lane.b32.xlu0 %v216, 120
    %v224 = vpop.permute.xlu0 %223
    %225 = vrot.lane.b32.xlu0 %v211, 112
    %v226 = vpop.permute.xlu0 %225
    %227 = vrot.lane.b32.xlu0 %v216, 112
    %v228 = vpop.permute.xlu0 %227
    %229 = vrot.lane.b32.xlu0 %v211, 104
    %v230 = vpop.permute.xlu0 %229
    %231 = vrot.lane.b32.xlu0 %v216, 104
    %v232 = vpop.permute.xlu0 %231
    %233 = vrot.lane.b32.xlu0 %v211, 96
    %v234 = vpop.permute.xlu0 %233
    %vm235 = vcmask 64512
    %v236 = vsel %vm235, %v211, 0
    %v238 = vsel %vm235, %v234, 0
    %240 = vmatprep.subr.mxu0 0.0
    %241 = vmatpush1.xpose.msra.mxu0 %v238
    %242 = vmatprep.subr.mxu0 0.0
    %243 = vmatpush1.xpose.msra.mxu0 0.0
    %244 = vmatprep.subr.mxu0 0.0
    %245 = vmatpush1.xpose.msra.mxu0 0.0
    %246 = vmatprep.subr.mxu0 0.0
    %247 = vmatpush1.xpose.msra.mxu0 0.0
    %248 = vmatprep.subr.mxu0 0.0
    %249 = vmatpush1.xpose.msra.mxu0 0.0
    %250 = vmatprep.subr.mxu0 0.0
    %251 = vmatpush1.xpose.msra.mxu0 0.0
    %252 = vmatprep.subr.mxu0 0.0
    %253 = vmatpush1.xpose.msra.mxu0 0.0
    %254 = vmatprep.subr.mxu0 0.0
    %255 = vmatpush1.xpose.msra.mxu0 0.0
    %256 = vmatprep.subr.mxu0 0.0
    %257 = vmatpush1.xpose.msra.mxu0 0.0
    %258 = vmatprep.subr.mxu0 0.0
    %259 = vmatpush1.xpose.msra.mxu0 0.0
    %260 = vmatprep.subr.mxu0 0.0
    %261 = vmatpush1.xpose.msra.mxu0 0.0
    %262 = vmatprep.subr.mxu0 0.0
    %263 = vmatpush1.xpose.msra.mxu0 0.0
    %264 = vmatprep.subr.mxu0 0.0
    %265 = vmatpush1.xpose.msra.mxu0 0.0
    %266 = vmatprep.subr.mxu0 0.0
    %267 = vmatpush1.xpose.msra.mxu0 0.0
    %268 = vmatprep.subr.mxu0 0.0
    %269 = vmatpush1.xpose.msra.mxu0 0.0
    %270 = vmatprep.subr.mxu0 0.0
    %271 = vmatpush1.xpose.msra.mxu0 0.0
    %272 = vmatprep.subr.mxu0 0.0
    %273 = vmatpush1.xpose.msra.mxu0 0.0
    %274 = vmatprep.subr.mxu0 0.0
    %275 = vmatpush1.xpose.msra.mxu0 0.0
    %276 = vmatprep.subr.mxu0 0.0
    %277 = vmatpush1.xpose.msra.mxu0 0.0
    %278 = vmatprep.subr.mxu0 0.0
    %279 = vmatpush1.xpose.msra.mxu0 0.0
    %280 = vmatprep.subr.mxu0 0.0
    %281 = vmatpush1.xpose.msra.mxu0 0.0
    %282 = vmatprep.subr.mxu0 0.0
    %283 = vmatpush1.xpose.msra.mxu0 0.0
    %284 = vmatprep.subr.mxu0 0.0
    %285 = vmatpush1.xpose.msra.mxu0 0.0
    %286 = vmatprep.subr.mxu0 0.0
    %287 = vmatpush1.xpose.msra.mxu0 0.0
    %288 = vmatprep.subr.mxu0 0.0
    %289 = vmatpush1.xpose.msra.mxu0 0.0
    %290 = vmatprep.subr.mxu0 0.0
    %291 = vmatpush1.xpose.msra.mxu0 0.0
    %292 = vmatprep.subr.mxu0 0.0
    %293 = vmatpush1.xpose.msra.mxu0 0.0
    %294 = vmatprep.subr.mxu0 0.0
    %295 = vmatpush1.xpose.msra.mxu0 0.0
    %296 = vmatprep.subr.mxu0 0.0
    %297 = vmatpush1.xpose.msra.mxu0 0.0
    %298 = vmatprep.subr.mxu0 0.0
    %299 = vmatpush1.xpose.msra.mxu0 0.0
    %300 = vmatprep.subr.mxu0 0.0
    %301 = vmatpush1.xpose.msra.mxu0 0.0
    %302 = vmatprep.subr.mxu0 0.0
    %303 = vmatpush1.xpose.msra.mxu0 0.0
    %304 = vmatprep.mubr.f32.mxu0 0.0
    %305 = vmatmul.mubr.f32.gmra.mrb[0].mxu0 %v236
    %v306 = vpop.f32.mrb[0].mxu0
    %v307 = vadd.f32 0.0, %v306
    %v308 = vpop.f32.mrb[0].mxu0
    %309 = vdwg.mxu0
    %310 = vrot.lane.b32.xlu0 %v216, 96
    %v311 = vpop.permute.xlu0 %310
    %v312 = vsel %vm235, %v216, 0
    %v314 = vsel %vm235, %v311, 0
    %316 = vmatprep.subr.mxu0 0.0
    %317 = vmatpush1.xpose.msra.mxu0 %v314
    %318 = vmatprep.subr.mxu0 0.0
    %319 = vmatpush1.xpose.msra.mxu0 0.0
    %320 = vmatprep.subr.mxu0 0.0
    %321 = vmatpush1.xpose.msra.mxu0 0.0
    %322 = vmatprep.subr.mxu0 0.0
    %323 = vmatpush1.xpose.msra.mxu0 0.0
    %324 = vmatprep.subr.mxu0 0.0
    %325 = vmatpush1.xpose.msra.mxu0 0.0
    %326 = vmatprep.subr.mxu0 0.0
    %327 = vmatpush1.xpose.msra.mxu0 0.0
    %328 = vmatprep.subr.mxu0 0.0
    %329 = vmatpush1.xpose.msra.mxu0 0.0
    %330 = vmatprep.subr.mxu0 0.0
    %331 = vmatpush1.xpose.msra.mxu0 0.0
    %332 = vmatprep.subr.mxu0 0.0
    %333 = vmatpush1.xpose.msra.mxu0 0.0
    %334 = vmatprep.subr.mxu0 0.0
    %335 = vmatpush1.xpose.msra.mxu0 0.0
    %336 = vmatprep.subr.mxu0 0.0
    %337 = vmatpush1.xpose.msra.mxu0 0.0
    %338 = vmatprep.subr.mxu0 0.0
    %339 = vmatpush1.xpose.msra.mxu0 0.0
    %340 = vmatprep.subr.mxu0 0.0
    %341 = vmatpush1.xpose.msra.mxu0 0.0
    %342 = vmatprep.subr.mxu0 0.0
    %343 = vmatpush1.xpose.msra.mxu0 0.0
    %344 = vmatprep.subr.mxu0 0.0
    %345 = vmatpush1.xpose.msra.mxu0 0.0
    %346 = vmatprep.subr.mxu0 0.0
    %347 = vmatpush1.xpose.msra.mxu0 0.0
    %348 = vmatprep.subr.mxu0 0.0
    %349 = vmatpush1.xpose.msra.mxu0 0.0
    %350 = vmatprep.subr.mxu0 0.0
    %351 = vmatpush1.xpose.msra.mxu0 0.0
    %352 = vmatprep.subr.mxu0 0.0
    %353 = vmatpush1.xpose.msra.mxu0 0.0
    %354 = vmatprep.subr.mxu0 0.0
    %355 = vmatpush1.xpose.msra.mxu0 0.0
    %356 = vmatprep.subr.mxu0 0.0
    %357 = vmatpush1.xpose.msra.mxu0 0.0
    %358 = vmatprep.subr.mxu0 0.0
    %359 = vmatpush1.xpose.msra.mxu0 0.0
    %360 = vmatprep.subr.mxu0 0.0
    %361 = vmatpush1.xpose.msra.mxu0 0.0
    %362 = vmatprep.subr.mxu0 0.0
    %363 = vmatpush1.xpose.msra.mxu0 0.0
    %364 = vmatprep.subr.mxu0 0.0
    %365 = vmatpush1.xpose.msra.mxu0 0.0
    %366 = vmatprep.subr.mxu0 0.0
    %367 = vmatpush1.xpose.msra.mxu0 0.0
    %368 = vmatprep.subr.mxu0 0.0
    %369 = vmatpush1.xpose.msra.mxu0 0.0
    %370 = vmatprep.subr.mxu0 0.0
    %371 = vmatpush1.xpose.msra.mxu0 0.0
    %372 = vmatprep.subr.mxu0 0.0
    %373 = vmatpush1.xpose.msra.mxu0 0.0
    %374 = vmatprep.subr.mxu0 0.0
    %375 = vmatpush1.xpose.msra.mxu0 0.0
    %376 = vmatprep.subr.mxu0 0.0
    %377 = vmatpush1.xpose.msra.mxu0 0.0
    %378 = vmatprep.subr.mxu0 0.0
    %379 = vmatpush1.xpose.msra.mxu0 0.0
    %380 = vmatprep.mubr.f32.mxu0 0.0
    %381 = vmatmul.mubr.f32.gmra.mrb[0].mxu0 %v312
    %v382 = vpop.f32.mrb[0].mxu0
    %v383 = vadd.f32 0.0, %v382
    %v384 = vpop.f32.mrb[0].mxu0
    %385 = vdwg.mxu0
    %386 = vrot.lane.b32.xlu0 %v222, 96
    %v387 = vpop.permute.xlu0 %386
    %v388 = vsel %vm235, %v222, 0
    %v390 = vsel %vm235, %v387, 0
    %392 = vmatprep.subr.mxu0 0.0
    %393 = vmatpush1.xpose.msra.mxu0 %v390
    %394 = vmatprep.subr.mxu0 0.0
    %395 = vmatpush1.xpose.msra.mxu0 0.0
    %396 = vmatprep.subr.mxu0 0.0
    %397 = vmatpush1.xpose.msra.mxu0 0.0
    %398 = vmatprep.subr.mxu0 0.0
    %399 = vmatpush1.xpose.msra.mxu0 0.0
    %400 = vmatprep.subr.mxu0 0.0
    %401 = vmatpush1.xpose.msra.mxu0 0.0
    %402 = vmatprep.subr.mxu0 0.0
    %403 = vmatpush1.xpose.msra.mxu0 0.0
    %404 = vmatprep.subr.mxu0 0.0
    %405 = vmatpush1.xpose.msra.mxu0 0.0
    %406 = vmatprep.subr.mxu0 0.0
    %407 = vmatpush1.xpose.msra.mxu0 0.0
    %408 = vmatprep.subr.mxu0 0.0
    %409 = vmatpush1.xpose.msra.mxu0 0.0
    %410 = vmatprep.subr.mxu0 0.0
    %411 = vmatpush1.xpose.msra.mxu0 0.0
    %412 = vmatprep.subr.mxu0 0.0
    %413 = vmatpush1.xpose.msra.mxu0 0.0
    %414 = vmatprep.subr.mxu0 0.0
    %415 = vmatpush1.xpose.msra.mxu0 0.0
    %416 = vmatprep.subr.mxu0 0.0
    %417 = vmatpush1.xpose.msra.mxu0 0.0
    %418 = vmatprep.subr.mxu0 0.0
    %419 = vmatpush1.xpose.msra.mxu0 0.0
    %420 = vmatprep.subr.mxu0 0.0
    %421 = vmatpush1.xpose.msra.mxu0 0.0
    %422 = vmatprep.subr.mxu0 0.0
    %423 = vmatpush1.xpose.msra.mxu0 0.0
    %424 = vmatprep.subr.mxu0 0.0
    %425 = vmatpush1.xpose.msra.mxu0 0.0
    %426 = vmatprep.subr.mxu0 0.0
    %427 = vmatpush1.xpose.msra.mxu0 0.0
    %428 = vmatprep.subr.mxu0 0.0
    %429 = vmatpush1.xpose.msra.mxu0 0.0
    %430 = vmatprep.subr.mxu0 0.0
    %431 = vmatpush1.xpose.msra.mxu0 0.0
    %432 = vmatprep.subr.mxu0 0.0
    %433 = vmatpush1.xpose.msra.mxu0 0.0
    %434 = vmatprep.subr.mxu0 0.0
    %435 = vmatpush1.xpose.msra.mxu0 0.0
    %436 = vmatprep.subr.mxu0 0.0
    %437 = vmatpush1.xpose.msra.mxu0 0.0
    %438 = vmatprep.subr.mxu0 0.0
    %439 = vmatpush1.xpose.msra.mxu0 0.0
    %440 = vmatprep.subr.mxu0 0.0
    %441 = vmatpush1.xpose.msra.mxu0 0.0
    %442 = vmatprep.subr.mxu0 0.0
    %443 = vmatpush1.xpose.msra.mxu0 0.0
    %444 = vmatprep.subr.mxu0 0.0
    %445 = vmatpush1.xpose.msra.mxu0 0.0
    %446 = vmatprep.subr.mxu0 0.0
    %447 = vmatpush1.xpose.msra.mxu0 0.0
    %448 = vmatprep.subr.mxu0 0.0
    %449 = vmatpush1.xpose.msra.mxu0 0.0
    %450 = vmatprep.subr.mxu0 0.0
    %451 = vmatpush1.xpose.msra.mxu0 0.0
    %452 = vmatprep.subr.mxu0 0.0
    %453 = vmatpush1.xpose.msra.mxu0 0.0
    %454 = vmatprep.subr.mxu0 0.0
    %455 = vmatpush1.xpose.msra.mxu0 0.0
    %456 = vmatprep.mubr.f32.mxu0 0.0
    %457 = vmatmul.mubr.f32.gmra.mrb[0].mxu0 %v388
    %v458 = vpop.f32.mrb[0].mxu0
    %v459 = vadd.f32 0.0, %v458
    %v460 = vpop.f32.mrb[0].mxu0
    %461 = vdwg.mxu0
    %462 = vrot.lane.b32.xlu0 %v224, 96
    %v463 = vpop.permute.xlu0 %462
    %v464 = vsel %vm235, %v224, 0
    %v466 = vsel %vm235, %v463, 0
    %468 = vmatprep.subr.mxu0 0.0
    %469 = vmatpush1.xpose.msra.mxu0 %v466
    %470 = vmatprep.subr.mxu0 0.0
    %471 = vmatpush1.xpose.msra.mxu0 0.0
    %472 = vmatprep.subr.mxu0 0.0
    %473 = vmatpush1.xpose.msra.mxu0 0.0
    %474 = vmatprep.subr.mxu0 0.0
    %475 = vmatpush1.xpose.msra.mxu0 0.0
    %476 = vmatprep.subr.mxu0 0.0
    %477 = vmatpush1.xpose.msra.mxu0 0.0
    %478 = vmatprep.subr.mxu0 0.0
    %479 = vmatpush1.xpose.msra.mxu0 0.0
    %480 = vmatprep.subr.mxu0 0.0
    %481 = vmatpush1.xpose.msra.mxu0 0.0
    %482 = vmatprep.subr.mxu0 0.0
    %483 = vmatpush1.xpose.msra.mxu0 0.0
    %484 = vmatprep.subr.mxu0 0.0
    %485 = vmatpush1.xpose.msra.mxu0 0.0
    %486 = vmatprep.subr.mxu0 0.0
    %487 = vmatpush1.xpose.msra.mxu0 0.0
    %488 = vmatprep.subr.mxu0 0.0
    %489 = vmatpush1.xpose.msra.mxu0 0.0
    %490 = vmatprep.subr.mxu0 0.0
    %491 = vmatpush1.xpose.msra.mxu0 0.0
    %492 = vmatprep.subr.mxu0 0.0
    %493 = vmatpush1.xpose.msra.mxu0 0.0
    %494 = vmatprep.subr.mxu0 0.0
    %495 = vmatpush1.xpose.msra.mxu0 0.0
    %496 = vmatprep.subr.mxu0 0.0
    %497 = vmatpush1.xpose.msra.mxu0 0.0
    %498 = vmatprep.subr.mxu0 0.0
    %499 = vmatpush1.xpose.msra.mxu0 0.0
    %500 = vmatprep.subr.mxu0 0.0
    %501 = vmatpush1.xpose.msra.mxu0 0.0
    %502 = vmatprep.subr.mxu0 0.0
    %503 = vmatpush1.xpose.msra.mxu0 0.0
    %504 = vmatprep.subr.mxu0 0.0
    %505 = vmatpush1.xpose.msra.mxu0 0.0
    %506 = vmatprep.subr.mxu0 0.0
    %507 = vmatpush1.xpose.msra.mxu0 0.0
    %508 = vmatprep.subr.mxu0 0.0
    %509 = vmatpush1.xpose.msra.mxu0 0.0
    %510 = vmatprep.subr.mxu0 0.0
    %511 = vmatpush1.xpose.msra.mxu0 0.0
    %512 = vmatprep.subr.mxu0 0.0
    %513 = vmatpush1.xpose.msra.mxu0 0.0
    %514 = vmatprep.subr.mxu0 0.0
    %515 = vmatpush1.xpose.msra.mxu0 0.0
    %516 = vmatprep.subr.mxu0 0.0
    %517 = vmatpush1.xpose.msra.mxu0 0.0
    %518 = vmatprep.subr.mxu0 0.0
    %519 = vmatpush1.xpose.msra.mxu0 0.0
    %520 = vmatprep.subr.mxu0 0.0
    %521 = vmatpush1.xpose.msra.mxu0 0.0
    %522 = vmatprep.subr.mxu0 0.0
    %523 = vmatpush1.xpose.msra.mxu0 0.0
    %524 = vmatprep.subr.mxu0 0.0
    %525 = vmatpush1.xpose.msra.mxu0 0.0
    %526 = vmatprep.subr.mxu0 0.0
    %527 = vmatpush1.xpose.msra.mxu0 0.0
    %528 = vmatprep.subr.mxu0 0.0
    %529 = vmatpush1.xpose.msra.mxu0 0.0
    %530 = vmatprep.subr.mxu0 0.0
    %531 = vmatpush1.xpose.msra.mxu0 0.0
    %532 = vmatprep.mubr.f32.mxu0 0.0
    %533 = vmatmul.mubr.f32.gmra.mrb[0].mxu0 %v464
    %v534 = vpop.f32.mrb[0].mxu0
    %v535 = vadd.f32 0.0, %v534
    %v536 = vpop.f32.mrb[0].mxu0
    %537 = vdwg.mxu0
    %538 = vrot.lane.b32.xlu0 %v226, 96
    %v539 = vpop.permute.xlu0 %538
    %v540 = vsel %vm235, %v226, 0
    %v542 = vsel %vm235, %v539, 0
    %544 = vmatprep.subr.mxu0 0.0
    %545 = vmatpush1.xpose.msra.mxu0 %v542
    %546 = vmatprep.subr.mxu0 0.0
    %547 = vmatpush1.xpose.msra.mxu0 0.0
    %548 = vmatprep.subr.mxu0 0.0
    %549 = vmatpush1.xpose.msra.mxu0 0.0
    %550 = vmatprep.subr.mxu0 0.0
    %551 = vmatpush1.xpose.msra.mxu0 0.0
    %552 = vmatprep.subr.mxu0 0.0
    %553 = vmatpush1.xpose.msra.mxu0 0.0
    %554 = vmatprep.subr.mxu0 0.0
    %555 = vmatpush1.xpose.msra.mxu0 0.0
    %556 = vmatprep.subr.mxu0 0.0
    %557 = vmatpush1.xpose.msra.mxu0 0.0
    %558 = vmatprep.subr.mxu0 0.0
    %559 = vmatpush1.xpose.msra.mxu0 0.0
    %560 = vmatprep.subr.mxu0 0.0
    %561 = vmatpush1.xpose.msra.mxu0 0.0
    %562 = vmatprep.subr.mxu0 0.0
    %563 = vmatpush1.xpose.msra.mxu0 0.0
    %564 = vmatprep.subr.mxu0 0.0
    %565 = vmatpush1.xpose.msra.mxu0 0.0
    %566 = vmatprep.subr.mxu0 0.0
    %567 = vmatpush1.xpose.msra.mxu0 0.0
    %568 = vmatprep.subr.mxu0 0.0
    %569 = vmatpush1.xpose.msra.mxu0 0.0
    %570 = vmatprep.subr.mxu0 0.0
    %571 = vmatpush1.xpose.msra.mxu0 0.0
    %572 = vmatprep.subr.mxu0 0.0
    %573 = vmatpush1.xpose.msra.mxu0 0.0
    %574 = vmatprep.subr.mxu0 0.0
    %575 = vmatpush1.xpose.msra.mxu0 0.0
    %576 = vmatprep.subr.mxu0 0.0
    %577 = vmatpush1.xpose.msra.mxu0 0.0
    %578 = vmatprep.subr.mxu0 0.0
    %579 = vmatpush1.xpose.msra.mxu0 0.0
    %580 = vmatprep.subr.mxu0 0.0
    %581 = vmatpush1.xpose.msra.mxu0 0.0
    %582 = vmatprep.subr.mxu0 0.0
    %583 = vmatpush1.xpose.msra.mxu0 0.0
    %584 = vmatprep.subr.mxu0 0.0
    %585 = vmatpush1.xpose.msra.mxu0 0.0
    %586 = vmatprep.subr.mxu0 0.0
    %587 = vmatpush1.xpose.msra.mxu0 0.0
    %588 = vmatprep.subr.mxu0 0.0
    %589 = vmatpush1.xpose.msra.mxu0 0.0
    %590 = vmatprep.subr.mxu0 0.0
    %591 = vmatpush1.xpose.msra.mxu0 0.0
    %592 = vmatprep.subr.mxu0 0.0
    %593 = vmatpush1.xpose.msra.mxu0 0.0
    %594 = vmatprep.subr.mxu0 0.0
    %595 = vmatpush1.xpose.msra.mxu0 0.0
    %596 = vmatprep.subr.mxu0 0.0
    %597 = vmatpush1.xpose.msra.mxu0 0.0
    %598 = vmatprep.subr.mxu0 0.0
    %599 = vmatpush1.xpose.msra.mxu0 0.0
    %600 = vmatprep.subr.mxu0 0.0
    %601 = vmatpush1.xpose.msra.mxu0 0.0
    %602 = vmatprep.subr.mxu0 0.0
    %603 = vmatpush1.xpose.msra.mxu0 0.0
    %604 = vmatprep.subr.mxu0 0.0
    %605 = vmatpush1.xpose.msra.mxu0 0.0
    %606 = vmatprep.subr.mxu0 0.0
    %607 = vmatpush1.xpose.msra.mxu0 0.0
    %608 = vmatprep.mubr.f32.mxu0 0.0
    %609 = vmatmul.mubr.f32.gmra.mrb[0].mxu0 %v540
    %v610 = vpop.f32.mrb[0].mxu0
    %v611 = vadd.f32 0.0, %v610
    %v612 = vpop.f32.mrb[0].mxu0
    %613 = vdwg.mxu0
    %614 = vrot.lane.b32.xlu0 %v228, 96
    %v615 = vpop.permute.xlu0 %614
    %v616 = vsel %vm235, %v228, 0
    %v618 = vsel %vm235, %v615, 0
    %620 = vmatprep.subr.mxu0 0.0
    %621 = vmatpush1.xpose.msra.mxu0 %v618
    %622 = vmatprep.subr.mxu0 0.0
    %623 = vmatpush1.xpose.msra.mxu0 0.0
    %624 = vmatprep.subr.mxu0 0.0
    %625 = vmatpush1.xpose.msra.mxu0 0.0
    %626 = vmatprep.subr.mxu0 0.0
    %627 = vmatpush1.xpose.msra.mxu0 0.0
    %628 = vmatprep.subr.mxu0 0.0
    %629 = vmatpush1.xpose.msra.mxu0 0.0
    %630 = vmatprep.subr.mxu0 0.0
    %631 = vmatpush1.xpose.msra.mxu0 0.0
    %632 = vmatprep.subr.mxu0 0.0
    %633 = vmatpush1.xpose.msra.mxu0 0.0
    %634 = vmatprep.subr.mxu0 0.0
    %635 = vmatpush1.xpose.msra.mxu0 0.0
    %636 = vmatprep.subr.mxu0 0.0
    %637 = vmatpush1.xpose.msra.mxu0 0.0
    %638 = vmatprep.subr.mxu0 0.0
    %639 = vmatpush1.xpose.msra.mxu0 0.0
    %640 = vmatprep.subr.mxu0 0.0
    %641 = vmatpush1.xpose.msra.mxu0 0.0
    %642 = vmatprep.subr.mxu0 0.0
    %643 = vmatpush1.xpose.msra.mxu0 0.0
    %644 = vmatprep.subr.mxu0 0.0
    %645 = vmatpush1.xpose.msra.mxu0 0.0
    %646 = vmatprep.subr.mxu0 0.0
    %647 = vmatpush1.xpose.msra.mxu0 0.0
    %648 = vmatprep.subr.mxu0 0.0
    %649 = vmatpush1.xpose.msra.mxu0 0.0
    %650 = vmatprep.subr.mxu0 0.0
    %651 = vmatpush1.xpose.msra.mxu0 0.0
    %652 = vmatprep.subr.mxu0 0.0
    %653 = vmatpush1.xpose.msra.mxu0 0.0
    %654 = vmatprep.subr.mxu0 0.0
    %655 = vmatpush1.xpose.msra.mxu0 0.0
    %656 = vmatprep.subr.mxu0 0.0
    %657 = vmatpush1.xpose.msra.mxu0 0.0
    %658 = vmatprep.subr.mxu0 0.0
    %659 = vmatpush1.xpose.msra.mxu0 0.0
    %660 = vmatprep.subr.mxu0 0.0
    %661 = vmatpush1.xpose.msra.mxu0 0.0
    %662 = vmatprep.subr.mxu0 0.0
    %663 = vmatpush1.xpose.msra.mxu0 0.0
    %664 = vmatprep.subr.mxu0 0.0
    %665 = vmatpush1.xpose.msra.mxu0 0.0
    %666 = vmatprep.subr.mxu0 0.0
    %667 = vmatpush1.xpose.msra.mxu0 0.0
    %668 = vmatprep.subr.mxu0 0.0
    %669 = vmatpush1.xpose.msra.mxu0 0.0
    %670 = vmatprep.subr.mxu0 0.0
    %671 = vmatpush1.xpose.msra.mxu0 0.0
    %672 = vmatprep.subr.mxu0 0.0
    %673 = vmatpush1.xpose.msra.mxu0 0.0
    %674 = vmatprep.subr.mxu0 0.0
    %675 = vmatpush1.xpose.msra.mxu0 0.0
    %676 = vmatprep.subr.mxu0 0.0
    %677 = vmatpush1.xpose.msra.mxu0 0.0
    %678 = vmatprep.subr.mxu0 0.0
    %679 = vmatpush1.xpose.msra.mxu0 0.0
    %680 = vmatprep.subr.mxu0 0.0
    %681 = vmatpush1.xpose.msra.mxu0 0.0
    %682 = vmatprep.subr.mxu0 0.0
    %683 = vmatpush1.xpose.msra.mxu0 0.0
    %684 = vmatprep.mubr.f32.mxu0 0.0
    %685 = vmatmul.mubr.f32.gmra.mrb[0].mxu0 %v616
    %v686 = vpop.f32.mrb[0].mxu0
    %v687 = vadd.f32 0.0, %v686
    %v688 = vpop.f32.mrb[0].mxu0
    %689 = vdwg.mxu0
    %690 = vrot.lane.b32.xlu0 %v230, 96
    %v691 = vpop.permute.xlu0 %690
    %v692 = vsel %vm235, %v230, 0
    %v694 = vsel %vm235, %v691, 0
    %696 = vmatprep.subr.mxu0 0.0
    %697 = vmatpush1.xpose.msra.mxu0 %v694
    %698 = vmatprep.subr.mxu0 0.0
    %699 = vmatpush1.xpose.msra.mxu0 0.0
    %700 = vmatprep.subr.mxu0 0.0
    %701 = vmatpush1.xpose.msra.mxu0 0.0
    %702 = vmatprep.subr.mxu0 0.0
    %703 = vmatpush1.xpose.msra.mxu0 0.0
    %704 = vmatprep.subr.mxu0 0.0
    %705 = vmatpush1.xpose.msra.mxu0 0.0
    %706 = vmatprep.subr.mxu0 0.0
    %707 = vmatpush1.xpose.msra.mxu0 0.0
    %708 = vmatprep.subr.mxu0 0.0
    %709 = vmatpush1.xpose.msra.mxu0 0.0
    %710 = vmatprep.subr.mxu0 0.0
    %711 = vmatpush1.xpose.msra.mxu0 0.0
    %712 = vmatprep.subr.mxu0 0.0
    %713 = vmatpush1.xpose.msra.mxu0 0.0
    %714 = vmatprep.subr.mxu0 0.0
    %715 = vmatpush1.xpose.msra.mxu0 0.0
    %716 = vmatprep.subr.mxu0 0.0
    %717 = vmatpush1.xpose.msra.mxu0 0.0
    %718 = vmatprep.subr.mxu0 0.0
    %719 = vmatpush1.xpose.msra.mxu0 0.0
    %720 = vmatprep.subr.mxu0 0.0
    %721 = vmatpush1.xpose.msra.mxu0 0.0
    %722 = vmatprep.subr.mxu0 0.0
    %723 = vmatpush1.xpose.msra.mxu0 0.0
    %724 = vmatprep.subr.mxu0 0.0
    %725 = vmatpush1.xpose.msra.mxu0 0.0
    %726 = vmatprep.subr.mxu0 0.0
    %727 = vmatpush1.xpose.msra.mxu0 0.0
    %728 = vmatprep.subr.mxu0 0.0
    %729 = vmatpush1.xpose.msra.mxu0 0.0
    %730 = vmatprep.subr.mxu0 0.0
    %731 = vmatpush1.xpose.msra.mxu0 0.0
    %732 = vmatprep.subr.mxu0 0.0
    %733 = vmatpush1.xpose.msra.mxu0 0.0
    %734 = vmatprep.subr.mxu0 0.0
    %735 = vmatpush1.xpose.msra.mxu0 0.0
    %736 = vmatprep.subr.mxu0 0.0
    %737 = vmatpush1.xpose.msra.mxu0 0.0
    %738 = vmatprep.subr.mxu0 0.0
    %739 = vmatpush1.xpose.msra.mxu0 0.0
    %740 = vmatprep.subr.mxu0 0.0
    %741 = vmatpush1.xpose.msra.mxu0 0.0
    %742 = vmatprep.subr.mxu0 0.0
    %743 = vmatpush1.xpose.msra.mxu0 0.0
    %744 = vmatprep.subr.mxu0 0.0
    %745 = vmatpush1.xpose.msra.mxu0 0.0
    %746 = vmatprep.subr.mxu0 0.0
    %747 = vmatpush1.xpose.msra.mxu0 0.0
    %748 = vmatprep.subr.mxu0 0.0
    %749 = vmatpush1.xpose.msra.mxu0 0.0
    %750 = vmatprep.subr.mxu0 0.0
    %751 = vmatpush1.xpose.msra.mxu0 0.0
    %752 = vmatprep.subr.mxu0 0.0
    %753 = vmatpush1.xpose.msra.mxu0 0.0
    %754 = vmatprep.subr.mxu0 0.0
    %755 = vmatpush1.xpose.msra.mxu0 0.0
    %756 = vmatprep.subr.mxu0 0.0
    %757 = vmatpush1.xpose.msra.mxu0 0.0
    %758 = vmatprep.subr.mxu0 0.0
    %759 = vmatpush1.xpose.msra.mxu0 0.0
    %760 = vmatprep.mubr.f32.mxu0 0.0
    %761 = vmatmul.mubr.f32.gmra.mrb[0].mxu0 %v692
    %v762 = vpop.f32.mrb[0].mxu0
    %v763 = vadd.f32 0.0, %v762
    %v764 = vpop.f32.mrb[0].mxu0
    %765 = vdwg.mxu0
    %766 = vrot.lane.b32.xlu0 %v232, 96
    %v767 = vpop.permute.xlu0 %766
    %v768 = vsel %vm235, %v232, 0
    %v770 = vsel %vm235, %v767, 0
    %772 = vmatprep.subr.mxu0 0.0
    %773 = vmatpush1.xpose.msra.mxu0 %v770
    %774 = vmatprep.subr.mxu0 0.0
    %775 = vmatpush1.xpose.msra.mxu0 0.0
    %776 = vmatprep.subr.mxu0 0.0
    %777 = vmatpush1.xpose.msra.mxu0 0.0
    %778 = vmatprep.subr.mxu0 0.0
    %779 = vmatpush1.xpose.msra.mxu0 0.0
    %780 = vmatprep.subr.mxu0 0.0
    %781 = vmatpush1.xpose.msra.mxu0 0.0
    %782 = vmatprep.subr.mxu0 0.0
    %783 = vmatpush1.xpose.msra.mxu0 0.0
    %784 = vmatprep.subr.mxu0 0.0
    %785 = vmatpush1.xpose.msra.mxu0 0.0
    %786 = vmatprep.subr.mxu0 0.0
    %787 = vmatpush1.xpose.msra.mxu0 0.0
    %788 = vmatprep.subr.mxu0 0.0
    %789 = vmatpush1.xpose.msra.mxu0 0.0
    %790 = vmatprep.subr.mxu0 0.0
    %791 = vmatpush1.xpose.msra.mxu0 0.0
    %792 = vmatprep.subr.mxu0 0.0
    %793 = vmatpush1.xpose.msra.mxu0 0.0
    %794 = vmatprep.subr.mxu0 0.0
    %795 = vmatpush1.xpose.msra.mxu0 0.0
    %796 = vmatprep.subr.mxu0 0.0
    %797 = vmatpush1.xpose.msra.mxu0 0.0
    %798 = vmatprep.subr.mxu0 0.0
    %799 = vmatpush1.xpose.msra.mxu0 0.0
    %800 = vmatprep.subr.mxu0 0.0
    %801 = vmatpush1.xpose.msra.mxu0 0.0
    %802 = vmatprep.subr.mxu0 0.0
    %803 = vmatpush1.xpose.msra.mxu0 0.0
    %804 = vmatprep.subr.mxu0 0.0
    %805 = vmatpush1.xpose.msra.mxu0 0.0
    %806 = vmatprep.subr.mxu0 0.0
    %807 = vmatpush1.xpose.msra.mxu0 0.0
    %808 = vmatprep.subr.mxu0 0.0
    %809 = vmatpush1.xpose.msra.mxu0 0.0
    %810 = vmatprep.subr.mxu0 0.0
    %811 = vmatpush1.xpose.msra.mxu0 0.0
    %812 = vmatprep.subr.mxu0 0.0
    %813 = vmatpush1.xpose.msra.mxu0 0.0
    %814 = vmatprep.subr.mxu0 0.0
    %815 = vmatpush1.xpose.msra.mxu0 0.0
    %816 = vmatprep.subr.mxu0 0.0
    %817 = vmatpush1.xpose.msra.mxu0 0.0
    %818 = vmatprep.subr.mxu0 0.0
    %819 = vmatpush1.xpose.msra.mxu0 0.0
    %820 = vmatprep.subr.mxu0 0.0
    %821 = vmatpush1.xpose.msra.mxu0 0.0
    %822 = vmatprep.subr.mxu0 0.0
    %823 = vmatpush1.xpose.msra.mxu0 0.0
    %824 = vmatprep.subr.mxu0 0.0
    %825 = vmatpush1.xpose.msra.mxu0 0.0
    %826 = vmatprep.subr.mxu0 0.0
    %827 = vmatpush1.xpose.msra.mxu0 0.0
    %828 = vmatprep.subr.mxu0 0.0
    %829 = vmatpush1.xpose.msra.mxu0 0.0
    %830 = vmatprep.subr.mxu0 0.0
    %831 = vmatpush1.xpose.msra.mxu0 0.0
    %832 = vmatprep.subr.mxu0 0.0
    %833 = vmatpush1.xpose.msra.mxu0 0.0
    %834 = vmatprep.subr.mxu0 0.0
    %835 = vmatpush1.xpose.msra.mxu0 0.0
    %836 = vmatprep.mubr.f32.mxu0 0.0
    %837 = vmatmul.mubr.f32.gmra.mrb[0].mxu0 %v768
    %v838 = vpop.f32.mrb[0].mxu0
    %v839 = vadd.f32 0.0, %v838
    %v840 = vpop.f32.mrb[0].mxu0
    %841 = vdwg.mxu0
    %v842 = vsel %vm235, %v307, -inf
    %843 = vmax.xlane.f32.xlu0 %v842
    %v844 = vpop.xlane.xlu0 %843
    %v845 = vsel %vm235, %v383, -inf
    %846 = vmax.xlane.f32.xlu0 %v845
    %v847 = vpop.xlane.xlu0 %846
    %v848 = vsel %vm235, %v459, -inf
    %849 = vmax.xlane.f32.xlu0 %v848
    %v850 = vpop.xlane.xlu0 %849
    %v851 = vsel %vm235, %v535, -inf
    %852 = vmax.xlane.f32.xlu0 %v851
    %v853 = vpop.xlane.xlu0 %852
    %v854 = vsel %vm235, %v611, -inf
    %855 = vmax.xlane.f32.xlu0 %v854
    %v856 = vpop.xlane.xlu0 %855
    %v857 = vsel %vm235, %v687, -inf
    %858 = vmax.xlane.f32.xlu0 %v857
    %v859 = vpop.xlane.xlu0 %858
    %v860 = vsel %vm235, %v763, -inf
    %861 = vmax.xlane.f32.xlu0 %v860
    %v862 = vpop.xlane.xlu0 %861
    %v863 = vsel %vm235, %v839, -inf
    %864 = vmax.xlane.f32.xlu0 %v863
    %v865 = vpop.xlane.xlu0 %864
    %v866 = vsub.f32 %v307, %v844
    %v867 = vsub.f32 %v383, %v847
    %v868 = vsub.f32 %v459, %v850
    %v869 = vsub.f32 %v535, %v853
    %v870 = vsub.f32 %v611, %v856
    %v871 = vsub.f32 %v687, %v859
    %v872 = vsub.f32 %v763, %v862
    %v873 = vsub.f32 %v839, %v865
    %v874 = vmul.f32 %v866, 1.442695
    %v875 = vpow.pop %v874
    %v876 = vmul.f32 %v867, 1.442695
    %v877 = vpow.pop %v876
    %v878 = vmul.f32 %v868, 1.442695
    %v879 = vpow.pop %v878
    %v880 = vmul.f32 %v869, 1.442695
    %v881 = vpow.pop %v880
    %v882 = vmul.f32 %v870, 1.442695
    %v883 = vpow.pop %v882
    %v884 = vmul.f32 %v871, 1.442695
    %v885 = vpow.pop %v884
    %v886 = vmul.f32 %v872, 1.442695
    %v887 = vpow.pop %v886
    %v888 = vmul.f32 %v873, 1.442695
    %v889 = vpow.pop %v888
    %v891 = vlaneseq
    %v892 = vshrl.u32 %v891, 7
    %v893 = vsub.s32 0, %v892
    %v894 = vrot.slane %v120, %v893
    %v896 = vmul.f32 %v875, %v894
    %v897 = vmul.f32 %v877, %v894
    %v898 = vmul.f32 %v879, %v894
    %v899 = vmul.f32 %v881, %v894
    %v900 = vmul.f32 %v883, %v894
    %v901 = vmul.f32 %v885, %v894
    %v902 = vmul.f32 %v887, %v894
    %v903 = vmul.f32 %v889, %v894
    %v904 = vsel %vm235, %v896, 0.0
    %905 = vadd.xlane.f32.xlu0 %v904
    %v906 = vpop.xlane.xlu0 %905
    %v907 = vsel %vm235, %v897, 0.0
    %908 = vadd.xlane.f32.xlu0 %v907
    %v909 = vpop.xlane.xlu0 %908
    %v910 = vsel %vm235, %v898, 0.0
    %911 = vadd.xlane.f32.xlu0 %v910
    %v912 = vpop.xlane.xlu0 %911
    %v913 = vsel %vm235, %v899, 0.0
    %914 = vadd.xlane.f32.xlu0 %v913
    %v915 = vpop.xlane.xlu0 %914
    %v916 = vsel %vm235, %v900, 0.0
    %917 = vadd.xlane.f32.xlu0 %v916
    %v918 = vpop.xlane.xlu0 %917
    %v919 = vsel %vm235, %v901, 0.0
    %920 = vadd.xlane.f32.xlu0 %v919
    %v921 = vpop.xlane.xlu0 %920
    %v922 = vsel %vm235, %v902, 0.0
    %923 = vadd.xlane.f32.xlu0 %v922
    %v924 = vpop.xlane.xlu0 %923
    %v925 = vsel %vm235, %v903, 0.0
    %926 = vadd.xlane.f32.xlu0 %v925
    %v927 = vpop.xlane.xlu0 %926
    %928 = vrot.lane.b32.xlu0 %v211, 64
    %v929 = vpop.permute.xlu0 %928
    %v932 = vsel %vm235, %v896, 0
    %934 = vmatprep.subr.mxu0 0.0
    %935 = vmatpush1.msra.mxu0 %v929
    %936 = vmatprep.subr.mxu0 0.0
    %937 = vmatpush1.msra.mxu0 0.0
    %938 = vmatprep.subr.mxu0 0.0
    %939 = vmatpush1.msra.mxu0 0.0
    %940 = vmatprep.subr.mxu0 0.0
    %941 = vmatpush1.msra.mxu0 0.0
    %942 = vmatprep.subr.mxu0 0.0
    %943 = vmatpush1.msra.mxu0 0.0
    %944 = vmatprep.subr.mxu0 0.0
    %945 = vmatpush1.msra.mxu0 0.0
    %946 = vmatprep.subr.mxu0 0.0
    %947 = vmatpush1.msra.mxu0 0.0
    %948 = vmatprep.subr.mxu0 0.0
    %949 = vmatpush1.msra.mxu0 0.0
    %950 = vmatprep.subr.mxu0 0.0
    %951 = vmatpush1.msra.mxu0 0.0
    %952 = vmatprep.subr.mxu0 0.0
    %953 = vmatpush1.msra.mxu0 0.0
    %954 = vmatprep.subr.mxu0 0.0
    %955 = vmatpush1.msra.mxu0 0.0
    %956 = vmatprep.subr.mxu0 0.0
    %957 = vmatpush1.msra.mxu0 0.0
    %958 = vmatprep.subr.mxu0 0.0
    %959 = vmatpush1.msra.mxu0 0.0
    %960 = vmatprep.subr.mxu0 0.0
    %961 = vmatpush1.msra.mxu0 0.0
    %962 = vmatprep.subr.mxu0 0.0
    %963 = vmatpush1.msra.mxu0 0.0
    %964 = vmatprep.subr.mxu0 0.0
    %965 = vmatpush1.msra.mxu0 0.0
    %966 = vmatprep.subr.mxu0 0.0
    %967 = vmatpush1.msra.mxu0 0.0
    %968 = vmatprep.subr.mxu0 0.0
    %969 = vmatpush1.msra.mxu0 0.0
    %970 = vmatprep.subr.mxu0 0.0
    %971 = vmatpush1.msra.mxu0 0.0
    %972 = vmatprep.subr.mxu0 0.0
    %973 = vmatpush1.msra.mxu0 0.0
    %974 = vmatprep.subr.mxu0 0.0
    %975 = vmatpush1.msra.mxu0 0.0
    %976 = vmatprep.subr.mxu0 0.0
    %977 = vmatpush1.msra.mxu0 0.0
    %978 = vmatprep.subr.mxu0 0.0
    %979 = vmatpush1.msra.mxu0 0.0
    %980 = vmatprep.subr.mxu0 0.0
    %981 = vmatpush1.msra.mxu0 0.0
    %982 = vmatprep.subr.mxu0 0.0
    %983 = vmatpush1.msra.mxu0 0.0
    %984 = vmatprep.subr.mxu0 0.0
    %985 = vmatpush1.msra.mxu0 0.0
    %986 = vmatprep.subr.mxu0 0.0
    %987 = vmatpush1.msra.mxu0 0.0
    %988 = vmatprep.subr.mxu0 0.0
    %989 = vmatpush1.msra.mxu0 0.0
    %990 = vmatprep.subr.mxu0 0.0
    %991 = vmatpush1.msra.mxu0 0.0
    %992 = vmatprep.subr.mxu0 0.0
    %993 = vmatpush1.msra.mxu0 0.0
    %994 = vmatprep.subr.mxu0 0.0
    %995 = vmatpush1.msra.mxu0 0.0
    %996 = vmatprep.subr.mxu0 0.0
    %997 = vmatpush1.msra.mxu0 0.0
    %998 = vmatprep.mubr.f32.mxu0 0.0
    %999 = vmatmul.mubr.f32.gmra.mrb[0].mxu0 %v932
    %v1000 = vpop.f32.mrb[0].mxu0
    %v1001 = vadd.f32 0.0, %v1000
    %v1002 = vpop.f32.mrb[0].mxu0
    %1003 = vdwg.mxu0
    %1004 = vrot.lane.b32.xlu0 %v216, 64
    %v1005 = vpop.permute.xlu0 %1004
    %v1008 = vsel %vm235, %v897, 0
    %1010 = vmatprep.subr.mxu0 0.0
    %1011 = vmatpush1.msra.mxu0 %v1005
    %1012 = vmatprep.subr.mxu0 0.0
    %1013 = vmatpush1.msra.mxu0 0.0
    %1014 = vmatprep.subr.mxu0 0.0
    %1015 = vmatpush1.msra.mxu0 0.0
    %1016 = vmatprep.subr.mxu0 0.0
    %1017 = vmatpush1.msra.mxu0 0.0
    %1018 = vmatprep.subr.mxu0 0.0
    %1019 = vmatpush1.msra.mxu0 0.0
    %1020 = vmatprep.subr.mxu0 0.0
    %1021 = vmatpush1.msra.mxu0 0.0
    %1022 = vmatprep.subr.mxu0 0.0
    %1023 = vmatpush1.msra.mxu0 0.0
    %1024 = vmatprep.subr.mxu0 0.0
    %1025 = vmatpush1.msra.mxu0 0.0
    %1026 = vmatprep.subr.mxu0 0.0
    %1027 = vmatpush1.msra.mxu0 0.0
    %1028 = vmatprep.subr.mxu0 0.0
    %1029 = vmatpush1.msra.mxu0 0.0
    %1030 = vmatprep.subr.mxu0 0.0
    %1031 = vmatpush1.msra.mxu0 0.0
    %1032 = vmatprep.subr.mxu0 0.0
    %1033 = vmatpush1.msra.mxu0 0.0
    %1034 = vmatprep.subr.mxu0 0.0
    %1035 = vmatpush1.msra.mxu0 0.0
    %1036 = vmatprep.subr.mxu0 0.0
    %1037 = vmatpush1.msra.mxu0 0.0
    %1038 = vmatprep.subr.mxu0 0.0
    %1039 = vmatpush1.msra.mxu0 0.0
    %1040 = vmatprep.subr.mxu0 0.0
    %1041 = vmatpush1.msra.mxu0 0.0
    %1042 = vmatprep.subr.mxu0 0.0
    %1043 = vmatpush1.msra.mxu0 0.0
    %1044 = vmatprep.subr.mxu0 0.0
    %1045 = vmatpush1.msra.mxu0 0.0
    %1046 = vmatprep.subr.mxu0 0.0
    %1047 = vmatpush1.msra.mxu0 0.0
    %1048 = vmatprep.subr.mxu0 0.0
    %1049 = vmatpush1.msra.mxu0 0.0
    %1050 = vmatprep.subr.mxu0 0.0
    %1051 = vmatpush1.msra.mxu0 0.0
    %1052 = vmatprep.subr.mxu0 0.0
    %1053 = vmatpush1.msra.mxu0 0.0
    %1054 = vmatprep.subr.mxu0 0.0
    %1055 = vmatpush1.msra.mxu0 0.0
    %1056 = vmatprep.subr.mxu0 0.0
    %1057 = vmatpush1.msra.mxu0 0.0
    %1058 = vmatprep.subr.mxu0 0.0
    %1059 = vmatpush1.msra.mxu0 0.0
    %1060 = vmatprep.subr.mxu0 0.0
    %1061 = vmatpush1.msra.mxu0 0.0
    %1062 = vmatprep.subr.mxu0 0.0
    %1063 = vmatpush1.msra.mxu0 0.0
    %1064 = vmatprep.subr.mxu0 0.0
    %1065 = vmatpush1.msra.mxu0 0.0
    %1066 = vmatprep.subr.mxu0 0.0
    %1067 = vmatpush1.msra.mxu0 0.0
    %1068 = vmatprep.subr.mxu0 0.0
    %1069 = vmatpush1.msra.mxu0 0.0
    %1070 = vmatprep.subr.mxu0 0.0
    %1071 = vmatpush1.msra.mxu0 0.0
    %1072 = vmatprep.subr.mxu0 0.0
    %1073 = vmatpush1.msra.mxu0 0.0
    %1074 = vmatprep.mubr.f32.mxu0 0.0
    %1075 = vmatmul.mubr.f32.gmra.mrb[0].mxu0 %v1008
    %v1076 = vpop.f32.mrb[0].mxu0
    %v1077 = vadd.f32 0.0, %v1076
    %v1078 = vpop.f32.mrb[0].mxu0
    %1079 = vdwg.mxu0
    %1080 = vrot.lane.b32.xlu0 %v222, 64
    %v1081 = vpop.permute.xlu0 %1080
    %v1084 = vsel %vm235, %v898, 0
    %1086 = vmatprep.subr.mxu0 0.0
    %1087 = vmatpush1.msra.mxu0 %v1081
    %1088 = vmatprep.subr.mxu0 0.0
    %1089 = vmatpush1.msra.mxu0 0.0
    %1090 = vmatprep.subr.mxu0 0.0
    %1091 = vmatpush1.msra.mxu0 0.0
    %1092 = vmatprep.subr.mxu0 0.0
    %1093 = vmatpush1.msra.mxu0 0.0
    %1094 = vmatprep.subr.mxu0 0.0
    %1095 = vmatpush1.msra.mxu0 0.0
    %1096 = vmatprep.subr.mxu0 0.0
    %1097 = vmatpush1.msra.mxu0 0.0
    %1098 = vmatprep.subr.mxu0 0.0
    %1099 = vmatpush1.msra.mxu0 0.0
    %1100 = vmatprep.subr.mxu0 0.0
    %1101 = vmatpush1.msra.mxu0 0.0
    %1102 = vmatprep.subr.mxu0 0.0
    %1103 = vmatpush1.msra.mxu0 0.0
    %1104 = vmatprep.subr.mxu0 0.0
    %1105 = vmatpush1.msra.mxu0 0.0
    %1106 = vmatprep.subr.mxu0 0.0
    %1107 = vmatpush1.msra.mxu0 0.0
    %1108 = vmatprep.subr.mxu0 0.0
    %1109 = vmatpush1.msra.mxu0 0.0
    %1110 = vmatprep.subr.mxu0 0.0
    %1111 = vmatpush1.msra.mxu0 0.0
    %1112 = vmatprep.subr.mxu0 0.0
    %1113 = vmatpush1.msra.mxu0 0.0
    %1114 = vmatprep.subr.mxu0 0.0
    %1115 = vmatpush1.msra.mxu0 0.0
    %1116 = vmatprep.subr.mxu0 0.0
    %1117 = vmatpush1.msra.mxu0 0.0
    %1118 = vmatprep.subr.mxu0 0.0
    %1119 = vmatpush1.msra.mxu0 0.0
    %1120 = vmatprep.subr.mxu0 0.0
    %1121 = vmatpush1.msra.mxu0 0.0
    %1122 = vmatprep.subr.mxu0 0.0
    %1123 = vmatpush1.msra.mxu0 0.0
    %1124 = vmatprep.subr.mxu0 0.0
    %1125 = vmatpush1.msra.mxu0 0.0
    %1126 = vmatprep.subr.mxu0 0.0
    %1127 = vmatpush1.msra.mxu0 0.0
    %1128 = vmatprep.subr.mxu0 0.0
    %1129 = vmatpush1.msra.mxu0 0.0
    %1130 = vmatprep.subr.mxu0 0.0
    %1131 = vmatpush1.msra.mxu0 0.0
    %1132 = vmatprep.subr.mxu0 0.0
    %1133 = vmatpush1.msra.mxu0 0.0
    %1134 = vmatprep.subr.mxu0 0.0
    %1135 = vmatpush1.msra.mxu0 0.0
    %1136 = vmatprep.subr.mxu0 0.0
    %1137 = vmatpush1.msra.mxu0 0.0
    %1138 = vmatprep.subr.mxu0 0.0
    %1139 = vmatpush1.msra.mxu0 0.0
    %1140 = vmatprep.subr.mxu0 0.0
    %1141 = vmatpush1.msra.mxu0 0.0
    %1142 = vmatprep.subr.mxu0 0.0
    %1143 = vmatpush1.msra.mxu0 0.0
    %1144 = vmatprep.subr.mxu0 0.0
    %1145 = vmatpush1.msra.mxu0 0.0
    %1146 = vmatprep.subr.mxu0 0.0
    %1147 = vmatpush1.msra.mxu0 0.0
    %1148 = vmatprep.subr.mxu0 0.0
    %1149 = vmatpush1.msra.mxu0 0.0
    %1150 = vmatprep.mubr.f32.mxu0 0.0
    %1151 = vmatmul.mubr.f32.gmra.mrb[0].mxu0 %v1084
    %v1152 = vpop.f32.mrb[0].mxu0
    %v1153 = vadd.f32 0.0, %v1152
    %v1154 = vpop.f32.mrb[0].mxu0
    %1155 = vdwg.mxu0
    %1156 = vrot.lane.b32.xlu0 %v224, 64
    %v1157 = vpop.permute.xlu0 %1156
    %v1160 = vsel %vm235, %v899, 0
    %1162 = vmatprep.subr.mxu0 0.0
    %1163 = vmatpush1.msra.mxu0 %v1157
    %1164 = vmatprep.subr.mxu0 0.0
    %1165 = vmatpush1.msra.mxu0 0.0
    %1166 = vmatprep.subr.mxu0 0.0
    %1167 = vmatpush1.msra.mxu0 0.0
    %1168 = vmatprep.subr.mxu0 0.0
    %1169 = vmatpush1.msra.mxu0 0.0
    %1170 = vmatprep.subr.mxu0 0.0
    %1171 = vmatpush1.msra.mxu0 0.0
    %1172 = vmatprep.subr.mxu0 0.0
    %1173 = vmatpush1.msra.mxu0 0.0
    %1174 = vmatprep.subr.mxu0 0.0
    %1175 = vmatpush1.msra.mxu0 0.0
    %1176 = vmatprep.subr.mxu0 0.0
    %1177 = vmatpush1.msra.mxu0 0.0
    %1178 = vmatprep.subr.mxu0 0.0
    %1179 = vmatpush1.msra.mxu0 0.0
    %1180 = vmatprep.subr.mxu0 0.0
    %1181 = vmatpush1.msra.mxu0 0.0
    %1182 = vmatprep.subr.mxu0 0.0
    %1183 = vmatpush1.msra.mxu0 0.0
    %1184 = vmatprep.subr.mxu0 0.0
    %1185 = vmatpush1.msra.mxu0 0.0
    %1186 = vmatprep.subr.mxu0 0.0
    %1187 = vmatpush1.msra.mxu0 0.0
    %1188 = vmatprep.subr.mxu0 0.0
    %1189 = vmatpush1.msra.mxu0 0.0
    %1190 = vmatprep.subr.mxu0 0.0
    %1191 = vmatpush1.msra.mxu0 0.0
    %1192 = vmatprep.subr.mxu0 0.0
    %1193 = vmatpush1.msra.mxu0 0.0
    %1194 = vmatprep.subr.mxu0 0.0
    %1195 = vmatpush1.msra.mxu0 0.0
    %1196 = vmatprep.subr.mxu0 0.0
    %1197 = vmatpush1.msra.mxu0 0.0
    %1198 = vmatprep.subr.mxu0 0.0
    %1199 = vmatpush1.msra.mxu0 0.0
    %1200 = vmatprep.subr.mxu0 0.0
    %1201 = vmatpush1.msra.mxu0 0.0
    %1202 = vmatprep.subr.mxu0 0.0
    %1203 = vmatpush1.msra.mxu0 0.0
    %1204 = vmatprep.subr.mxu0 0.0
    %1205 = vmatpush1.msra.mxu0 0.0
    %1206 = vmatprep.subr.mxu0 0.0
    %1207 = vmatpush1.msra.mxu0 0.0
    %1208 = vmatprep.subr.mxu0 0.0
    %1209 = vmatpush1.msra.mxu0 0.0
    %1210 = vmatprep.subr.mxu0 0.0
    %1211 = vmatpush1.msra.mxu0 0.0
    %1212 = vmatprep.subr.mxu0 0.0
    %1213 = vmatpush1.msra.mxu0 0.0
    %1214 = vmatprep.subr.mxu0 0.0
    %1215 = vmatpush1.msra.mxu0 0.0
    %1216 = vmatprep.subr.mxu0 0.0
    %1217 = vmatpush1.msra.mxu0 0.0
    %1218 = vmatprep.subr.mxu0 0.0
    %1219 = vmatpush1.msra.mxu0 0.0
    %1220 = vmatprep.subr.mxu0 0.0
    %1221 = vmatpush1.msra.mxu0 0.0
    %1222 = vmatprep.subr.mxu0 0.0
    %1223 = vmatpush1.msra.mxu0 0.0
    %1224 = vmatprep.subr.mxu0 0.0
    %1225 = vmatpush1.msra.mxu0 0.0
    %1226 = vmatprep.mubr.f32.mxu0 0.0
    %1227 = vmatmul.mubr.f32.gmra.mrb[0].mxu0 %v1160
    %v1228 = vpop.f32.mrb[0].mxu0
    %v1229 = vadd.f32 0.0, %v1228
    %v1230 = vpop.f32.mrb[0].mxu0
    %1231 = vdwg.mxu0
    %1232 = vrot.lane.b32.xlu0 %v226, 64
    %v1233 = vpop.permute.xlu0 %1232
    %v1236 = vsel %vm235, %v900, 0
    %1238 = vmatprep.subr.mxu0 0.0
    %1239 = vmatpush1.msra.mxu0 %v1233
    %1240 = vmatprep.subr.mxu0 0.0
    %1241 = vmatpush1.msra.mxu0 0.0
    %1242 = vmatprep.subr.mxu0 0.0
    %1243 = vmatpush1.msra.mxu0 0.0
    %1244 = vmatprep.subr.mxu0 0.0
    %1245 = vmatpush1.msra.mxu0 0.0
    %1246 = vmatprep.subr.mxu0 0.0
    %1247 = vmatpush1.msra.mxu0 0.0
    %1248 = vmatprep.subr.mxu0 0.0
    %1249 = vmatpush1.msra.mxu0 0.0
    %1250 = vmatprep.subr.mxu0 0.0
    %1251 = vmatpush1.msra.mxu0 0.0
    %1252 = vmatprep.subr.mxu0 0.0
    %1253 = vmatpush1.msra.mxu0 0.0
    %1254 = vmatprep.subr.mxu0 0.0
    %1255 = vmatpush1.msra.mxu0 0.0
    %1256 = vmatprep.subr.mxu0 0.0
    %1257 = vmatpush1.msra.mxu0 0.0
    %1258 = vmatprep.subr.mxu0 0.0
    %1259 = vmatpush1.msra.mxu0 0.0
    %1260 = vmatprep.subr.mxu0 0.0
    %1261 = vmatpush1.msra.mxu0 0.0
    %1262 = vmatprep.subr.mxu0 0.0
    %1263 = vmatpush1.msra.mxu0 0.0
    %1264 = vmatprep.subr.mxu0 0.0
    %1265 = vmatpush1.msra.mxu0 0.0
    %1266 = vmatprep.subr.mxu0 0.0
    %1267 = vmatpush1.msra.mxu0 0.0
    %1268 = vmatprep.subr.mxu0 0.0
    %1269 = vmatpush1.msra.mxu0 0.0
    %1270 = vmatprep.subr.mxu0 0.0
    %1271 = vmatpush1.msra.mxu0 0.0
    %1272 = vmatprep.subr.mxu0 0.0
    %1273 = vmatpush1.msra.mxu0 0.0
    %1274 = vmatprep.subr.mxu0 0.0
    %1275 = vmatpush1.msra.mxu0 0.0
    %1276 = vmatprep.subr.mxu0 0.0
    %1277 = vmatpush1.msra.mxu0 0.0
    %1278 = vmatprep.subr.mxu0 0.0
    %1279 = vmatpush1.msra.mxu0 0.0
    %1280 = vmatprep.subr.mxu0 0.0
    %1281 = vmatpush1.msra.mxu0 0.0
    %1282 = vmatprep.subr.mxu0 0.0
    %1283 = vmatpush1.msra.mxu0 0.0
    %1284 = vmatprep.subr.mxu0 0.0
    %1285 = vmatpush1.msra.mxu0 0.0
    %1286 = vmatprep.subr.mxu0 0.0
    %1287 = vmatpush1.msra.mxu0 0.0
    %1288 = vmatprep.subr.mxu0 0.0
    %1289 = vmatpush1.msra.mxu0 0.0
    %1290 = vmatprep.subr.mxu0 0.0
    %1291 = vmatpush1.msra.mxu0 0.0
    %1292 = vmatprep.subr.mxu0 0.0
    %1293 = vmatpush1.msra.mxu0 0.0
    %1294 = vmatprep.subr.mxu0 0.0
    %1295 = vmatpush1.msra.mxu0 0.0
    %1296 = vmatprep.subr.mxu0 0.0
    %1297 = vmatpush1.msra.mxu0 0.0
    %1298 = vmatprep.subr.mxu0 0.0
    %1299 = vmatpush1.msra.mxu0 0.0
    %1300 = vmatprep.subr.mxu0 0.0
    %1301 = vmatpush1.msra.mxu0 0.0
    %1302 = vmatprep.mubr.f32.mxu0 0.0
    %1303 = vmatmul.mubr.f32.gmra.mrb[0].mxu0 %v1236
    %v1304 = vpop.f32.mrb[0].mxu0
    %v1305 = vadd.f32 0.0, %v1304
    %v1306 = vpop.f32.mrb[0].mxu0
    %1307 = vdwg.mxu0
    %1308 = vrot.lane.b32.xlu0 %v228, 64
    %v1309 = vpop.permute.xlu0 %1308
    %v1312 = vsel %vm235, %v901, 0
    %1314 = vmatprep.subr.mxu0 0.0
    %1315 = vmatpush1.msra.mxu0 %v1309
    %1316 = vmatprep.subr.mxu0 0.0
    %1317 = vmatpush1.msra.mxu0 0.0
    %1318 = vmatprep.subr.mxu0 0.0
    %1319 = vmatpush1.msra.mxu0 0.0
    %1320 = vmatprep.subr.mxu0 0.0
    %1321 = vmatpush1.msra.mxu0 0.0
    %1322 = vmatprep.subr.mxu0 0.0
    %1323 = vmatpush1.msra.mxu0 0.0
    %1324 = vmatprep.subr.mxu0 0.0
    %1325 = vmatpush1.msra.mxu0 0.0
    %1326 = vmatprep.subr.mxu0 0.0
    %1327 = vmatpush1.msra.mxu0 0.0
    %1328 = vmatprep.subr.mxu0 0.0
    %1329 = vmatpush1.msra.mxu0 0.0
    %1330 = vmatprep.subr.mxu0 0.0
    %1331 = vmatpush1.msra.mxu0 0.0
    %1332 = vmatprep.subr.mxu0 0.0
    %1333 = vmatpush1.msra.mxu0 0.0
    %1334 = vmatprep.subr.mxu0 0.0
    %1335 = vmatpush1.msra.mxu0 0.0
    %1336 = vmatprep.subr.mxu0 0.0
    %1337 = vmatpush1.msra.mxu0 0.0
    %1338 = vmatprep.subr.mxu0 0.0
    %1339 = vmatpush1.msra.mxu0 0.0
    %1340 = vmatprep.subr.mxu0 0.0
    %1341 = vmatpush1.msra.mxu0 0.0
    %1342 = vmatprep.subr.mxu0 0.0
    %1343 = vmatpush1.msra.mxu0 0.0
    %1344 = vmatprep.subr.mxu0 0.0
    %1345 = vmatpush1.msra.mxu0 0.0
    %1346 = vmatprep.subr.mxu0 0.0
    %1347 = vmatpush1.msra.mxu0 0.0
    %1348 = vmatprep.subr.mxu0 0.0
    %1349 = vmatpush1.msra.mxu0 0.0
    %1350 = vmatprep.subr.mxu0 0.0
    %1351 = vmatpush1.msra.mxu0 0.0
    %1352 = vmatprep.subr.mxu0 0.0
    %1353 = vmatpush1.msra.mxu0 0.0
    %1354 = vmatprep.subr.mxu0 0.0
    %1355 = vmatpush1.msra.mxu0 0.0
    %1356 = vmatprep.subr.mxu0 0.0
    %1357 = vmatpush1.msra.mxu0 0.0
    %1358 = vmatprep.subr.mxu0 0.0
    %1359 = vmatpush1.msra.mxu0 0.0
    %1360 = vmatprep.subr.mxu0 0.0
    %1361 = vmatpush1.msra.mxu0 0.0
    %1362 = vmatprep.subr.mxu0 0.0
    %1363 = vmatpush1.msra.mxu0 0.0
    %1364 = vmatprep.subr.mxu0 0.0
    %1365 = vmatpush1.msra.mxu0 0.0
    %1366 = vmatprep.subr.mxu0 0.0
    %1367 = vmatpush1.msra.mxu0 0.0
    %1368 = vmatprep.subr.mxu0 0.0
    %1369 = vmatpush1.msra.mxu0 0.0
    %1370 = vmatprep.subr.mxu0 0.0
    %1371 = vmatpush1.msra.mxu0 0.0
    %1372 = vmatprep.subr.mxu0 0.0
    %1373 = vmatpush1.msra.mxu0 0.0
    %1374 = vmatprep.subr.mxu0 0.0
    %1375 = vmatpush1.msra.mxu0 0.0
    %1376 = vmatprep.subr.mxu0 0.0
    %1377 = vmatpush1.msra.mxu0 0.0
    %1378 = vmatprep.mubr.f32.mxu0 0.0
    %1379 = vmatmul.mubr.f32.gmra.mrb[0].mxu0 %v1312
    %v1380 = vpop.f32.mrb[0].mxu0
    %v1381 = vadd.f32 0.0, %v1380
    %v1382 = vpop.f32.mrb[0].mxu0
    %1383 = vdwg.mxu0
    %1384 = vrot.lane.b32.xlu0 %v230, 64
    %v1385 = vpop.permute.xlu0 %1384
    %v1388 = vsel %vm235, %v902, 0
    %1390 = vmatprep.subr.mxu0 0.0
    %1391 = vmatpush1.msra.mxu0 %v1385
    %1392 = vmatprep.subr.mxu0 0.0
    %1393 = vmatpush1.msra.mxu0 0.0
    %1394 = vmatprep.subr.mxu0 0.0
    %1395 = vmatpush1.msra.mxu0 0.0
    %1396 = vmatprep.subr.mxu0 0.0
    %1397 = vmatpush1.msra.mxu0 0.0
    %1398 = vmatprep.subr.mxu0 0.0
    %1399 = vmatpush1.msra.mxu0 0.0
    %1400 = vmatprep.subr.mxu0 0.0
    %1401 = vmatpush1.msra.mxu0 0.0
    %1402 = vmatprep.subr.mxu0 0.0
    %1403 = vmatpush1.msra.mxu0 0.0
    %1404 = vmatprep.subr.mxu0 0.0
    %1405 = vmatpush1.msra.mxu0 0.0
    %1406 = vmatprep.subr.mxu0 0.0
    %1407 = vmatpush1.msra.mxu0 0.0
    %1408 = vmatprep.subr.mxu0 0.0
    %1409 = vmatpush1.msra.mxu0 0.0
    %1410 = vmatprep.subr.mxu0 0.0
    %1411 = vmatpush1.msra.mxu0 0.0
    %1412 = vmatprep.subr.mxu0 0.0
    %1413 = vmatpush1.msra.mxu0 0.0
    %1414 = vmatprep.subr.mxu0 0.0
    %1415 = vmatpush1.msra.mxu0 0.0
    %1416 = vmatprep.subr.mxu0 0.0
    %1417 = vmatpush1.msra.mxu0 0.0
    %1418 = vmatprep.subr.mxu0 0.0
    %1419 = vmatpush1.msra.mxu0 0.0
    %1420 = vmatprep.subr.mxu0 0.0
    %1421 = vmatpush1.msra.mxu0 0.0
    %1422 = vmatprep.subr.mxu0 0.0
    %1423 = vmatpush1.msra.mxu0 0.0
    %1424 = vmatprep.subr.mxu0 0.0
    %1425 = vmatpush1.msra.mxu0 0.0
    %1426 = vmatprep.subr.mxu0 0.0
    %1427 = vmatpush1.msra.mxu0 0.0
    %1428 = vmatprep.subr.mxu0 0.0
    %1429 = vmatpush1.msra.mxu0 0.0
    %1430 = vmatprep.subr.mxu0 0.0
    %1431 = vmatpush1.msra.mxu0 0.0
    %1432 = vmatprep.subr.mxu0 0.0
    %1433 = vmatpush1.msra.mxu0 0.0
    %1434 = vmatprep.subr.mxu0 0.0
    %1435 = vmatpush1.msra.mxu0 0.0
    %1436 = vmatprep.subr.mxu0 0.0
    %1437 = vmatpush1.msra.mxu0 0.0
    %1438 = vmatprep.subr.mxu0 0.0
    %1439 = vmatpush1.msra.mxu0 0.0
    %1440 = vmatprep.subr.mxu0 0.0
    %1441 = vmatpush1.msra.mxu0 0.0
    %1442 = vmatprep.subr.mxu0 0.0
    %1443 = vmatpush1.msra.mxu0 0.0
    %1444 = vmatprep.subr.mxu0 0.0
    %1445 = vmatpush1.msra.mxu0 0.0
    %1446 = vmatprep.subr.mxu0 0.0
    %1447 = vmatpush1.msra.mxu0 0.0
    %1448 = vmatprep.subr.mxu0 0.0
    %1449 = vmatpush1.msra.mxu0 0.0
    %1450 = vmatprep.subr.mxu0 0.0
    %1451 = vmatpush1.msra.mxu0 0.0
    %1452 = vmatprep.subr.mxu0 0.0
    %1453 = vmatpush1.msra.mxu0 0.0
    %1454 = vmatprep.mubr.f32.mxu0 0.0
    %1455 = vmatmul.mubr.f32.gmra.mrb[0].mxu0 %v1388
    %v1456 = vpop.f32.mrb[0].mxu0
    %v1457 = vadd.f32 0.0, %v1456
    %v1458 = vpop.f32.mrb[0].mxu0
    %1459 = vdwg.mxu0
    %1460 = vrot.lane.b32.xlu0 %v232, 64
    %v1461 = vpop.permute.xlu0 %1460
    %v1464 = vsel %vm235, %v903, 0
    %1466 = vmatprep.subr.mxu0 0.0
    %1467 = vmatpush1.msra.mxu0 %v1461
    %1468 = vmatprep.subr.mxu0 0.0
    %1469 = vmatpush1.msra.mxu0 0.0
    %1470 = vmatprep.subr.mxu0 0.0
    %1471 = vmatpush1.msra.mxu0 0.0
    %1472 = vmatprep.subr.mxu0 0.0
    %1473 = vmatpush1.msra.mxu0 0.0
    %1474 = vmatprep.subr.mxu0 0.0
    %1475 = vmatpush1.msra.mxu0 0.0
    %1476 = vmatprep.subr.mxu0 0.0
    %1477 = vmatpush1.msra.mxu0 0.0
    %1478 = vmatprep.subr.mxu0 0.0
    %1479 = vmatpush1.msra.mxu0 0.0
    %1480 = vmatprep.subr.mxu0 0.0
    %1481 = vmatpush1.msra.mxu0 0.0
    %1482 = vmatprep.subr.mxu0 0.0
    %1483 = vmatpush1.msra.mxu0 0.0
    %1484 = vmatprep.subr.mxu0 0.0
    %1485 = vmatpush1.msra.mxu0 0.0
    %1486 = vmatprep.subr.mxu0 0.0
    %1487 = vmatpush1.msra.mxu0 0.0
    %1488 = vmatprep.subr.mxu0 0.0
    %1489 = vmatpush1.msra.mxu0 0.0
    %1490 = vmatprep.subr.mxu0 0.0
    %1491 = vmatpush1.msra.mxu0 0.0
    %1492 = vmatprep.subr.mxu0 0.0
    %1493 = vmatpush1.msra.mxu0 0.0
    %1494 = vmatprep.subr.mxu0 0.0
    %1495 = vmatpush1.msra.mxu0 0.0
    %1496 = vmatprep.subr.mxu0 0.0
    %1497 = vmatpush1.msra.mxu0 0.0
    %1498 = vmatprep.subr.mxu0 0.0
    %1499 = vmatpush1.msra.mxu0 0.0
    %1500 = vmatprep.subr.mxu0 0.0
    %1501 = vmatpush1.msra.mxu0 0.0
    %1502 = vmatprep.subr.mxu0 0.0
    %1503 = vmatpush1.msra.mxu0 0.0
    %1504 = vmatprep.subr.mxu0 0.0
    %1505 = vmatpush1.msra.mxu0 0.0
    %1506 = vmatprep.subr.mxu0 0.0
    %1507 = vmatpush1.msra.mxu0 0.0
    %1508 = vmatprep.subr.mxu0 0.0
    %1509 = vmatpush1.msra.mxu0 0.0
    %1510 = vmatprep.subr.mxu0 0.0
    %1511 = vmatpush1.msra.mxu0 0.0
    %1512 = vmatprep.subr.mxu0 0.0
    %1513 = vmatpush1.msra.mxu0 0.0
    %1514 = vmatprep.subr.mxu0 0.0
    %1515 = vmatpush1.msra.mxu0 0.0
    %1516 = vmatprep.subr.mxu0 0.0
    %1517 = vmatpush1.msra.mxu0 0.0
    %1518 = vmatprep.subr.mxu0 0.0
    %1519 = vmatpush1.msra.mxu0 0.0
    %1520 = vmatprep.subr.mxu0 0.0
    %1521 = vmatpush1.msra.mxu0 0.0
    %1522 = vmatprep.subr.mxu0 0.0
    %1523 = vmatpush1.msra.mxu0 0.0
    %1524 = vmatprep.subr.mxu0 0.0
    %1525 = vmatpush1.msra.mxu0 0.0
    %1526 = vmatprep.subr.mxu0 0.0
    %1527 = vmatpush1.msra.mxu0 0.0
    %1528 = vmatprep.subr.mxu0 0.0
    %1529 = vmatpush1.msra.mxu0 0.0
    %1530 = vmatprep.mubr.f32.mxu0 0.0
    %1531 = vmatmul.mubr.f32.gmra.mrb[0].mxu0 %v1464
    %v1532 = vpop.f32.mrb[0].mxu0
    %v1533 = vadd.f32 0.0, %v1532
    %v1534 = vpop.f32.mrb[0].mxu0
    %1535 = vdwg.mxu0
    %v1536 = vrcp.pop %v906
    %v1537 = vrcp.pop %v909
    %v1538 = vrcp.pop %v912
    %v1539 = vrcp.pop %v915
    %v1540 = vrcp.pop %v918
    %v1541 = vrcp.pop %v921
    %v1542 = vrcp.pop %v924
    %v1543 = vrcp.pop %v927
    %v1544 = vmul.f32 %v1001, %v1536
    %v1545 = vmul.f32 %v1077, %v1537
    %v1546 = vmul.f32 %v1153, %v1538
    %v1547 = vmul.f32 %v1229, %v1539
    %v1548 = vmul.f32 %v1305, %v1540
    %v1549 = vmul.f32 %v1381, %v1541
    %v1550 = vmul.f32 %v1457, %v1542
    %v1551 = vmul.f32 %v1533, %v1543
    %1554 = vrot.lane.b32.xlu0 %v1546, 8
    %v1555 = vpop.permute.xlu0 %1554
    %1556 = vrot.lane.b32.xlu0 %v1547, 8
    %v1557 = vpop.permute.xlu0 %1556
    %1562 = vrot.lane.b32.xlu0 %v1548, 16
    %v1563 = vpop.permute.xlu0 %1562
    %1564 = vrot.lane.b32.xlu0 %v1549, 16
    %v1565 = vpop.permute.xlu0 %1564
    %1570 = vrot.lane.b32.xlu0 %v1550, 24
    %v1571 = vpop.permute.xlu0 %1570
    %1572 = vrot.lane.b32.xlu0 %v1551, 24
    %v1573 = vpop.permute.xlu0 %1572
    %v1576 = vsel %vm235, %v1544, %v1555
    %v1577 = vsel %vm235, %v1545, %v1557
    %vm1578 = vcmask 130048
    %v1579 = vsel %vm1578, %v1576, %v1563
    %v1580 = vsel %vm1578, %v1577, %v1565
    %vm1581 = vcmask 195584
    %v1582 = vsel %vm1581, %v1579, %v1571
    %v1583 = vsel %vm1581, %v1580, %v1573
    %v1584 = vld [vmem:[#allocation8] sm:$0xff]
    %v1585 = vld [vmem:[#allocation8 + $0x8] sm:$0xff]
    %v1586 = vld [vmem:[#allocation8 + $0x10] sm:$0xff]
    %v1587 = vld [vmem:[#allocation8 + $0x18] sm:$0xff]
    %v1589 = vsel %vm137, %v1582, 0
    %v1592 = vsel %vm137, %v1583, 0
    %1594 = vmatprep.subr.mxu0 0.0
    %1595 = vmatpush1.msra.mxu0 %v1584
    %1596 = vmatprep.subr.mxu0 0.0
    %1597 = vmatpush1.msra.mxu0 %v1585
    %1598 = vmatprep.subr.mxu0 0.0
    %1599 = vmatpush1.msra.mxu0 %v1586
    %1600 = vmatprep.subr.mxu0 0.0
    %1601 = vmatpush1.msra.mxu0 %v1587
    %1602 = vmatprep.subr.mxu0 0.0
    %1603 = vmatpush1.msra.mxu0 0.0
    %1604 = vmatprep.subr.mxu0 0.0
    %1605 = vmatpush1.msra.mxu0 0.0
    %1606 = vmatprep.subr.mxu0 0.0
    %1607 = vmatpush1.msra.mxu0 0.0
    %1608 = vmatprep.subr.mxu0 0.0
    %1609 = vmatpush1.msra.mxu0 0.0
    %1610 = vmatprep.subr.mxu0 0.0
    %1611 = vmatpush1.msra.mxu0 0.0
    %1612 = vmatprep.subr.mxu0 0.0
    %1613 = vmatpush1.msra.mxu0 0.0
    %1614 = vmatprep.subr.mxu0 0.0
    %1615 = vmatpush1.msra.mxu0 0.0
    %1616 = vmatprep.subr.mxu0 0.0
    %1617 = vmatpush1.msra.mxu0 0.0
    %1618 = vmatprep.subr.mxu0 0.0
    %1619 = vmatpush1.msra.mxu0 0.0
    %1620 = vmatprep.subr.mxu0 0.0
    %1621 = vmatpush1.msra.mxu0 0.0
    %1622 = vmatprep.subr.mxu0 0.0
    %1623 = vmatpush1.msra.mxu0 0.0
    %1624 = vmatprep.subr.mxu0 0.0
    %1625 = vmatpush1.msra.mxu0 0.0
    %1626 = vmatprep.subr.mxu0 0.0
    %1627 = vmatpush1.msra.mxu0 0.0
    %1628 = vmatprep.subr.mxu0 0.0
    %1629 = vmatpush1.msra.mxu0 0.0
    %1630 = vmatprep.subr.mxu0 0.0
    %1631 = vmatpush1.msra.mxu0 0.0
    %1632 = vmatprep.subr.mxu0 0.0
    %1633 = vmatpush1.msra.mxu0 0.0
    %1634 = vmatprep.subr.mxu0 0.0
    %1635 = vmatpush1.msra.mxu0 0.0
    %1636 = vmatprep.subr.mxu0 0.0
    %1637 = vmatpush1.msra.mxu0 0.0
    %1638 = vmatprep.subr.mxu0 0.0
    %1639 = vmatpush1.msra.mxu0 0.0
    %1640 = vmatprep.subr.mxu0 0.0
    %1641 = vmatpush1.msra.mxu0 0.0
    %1642 = vmatprep.subr.mxu0 0.0
    %1643 = vmatpush1.msra.mxu0 0.0
    %1644 = vmatprep.subr.mxu0 0.0
    %1645 = vmatpush1.msra.mxu0 0.0
    %1646 = vmatprep.subr.mxu0 0.0
    %1647 = vmatpush1.msra.mxu0 0.0
    %1648 = vmatprep.subr.mxu0 0.0
    %1649 = vmatpush1.msra.mxu0 0.0
    %1650 = vmatprep.subr.mxu0 0.0
    %1651 = vmatpush1.msra.mxu0 0.0
    %1652 = vmatprep.subr.mxu0 0.0
    %1653 = vmatpush1.msra.mxu0 0.0
    %1654 = vmatprep.subr.mxu0 0.0
    %1655 = vmatpush1.msra.mxu0 0.0
    %1656 = vmatprep.subr.mxu0 0.0
    %1657 = vmatpush1.msra.mxu0 0.0
    %1658 = vmatprep.mubr.f32.mxu0 0.0
    %1659 = vmatmul.mubr.f32.gmra.mrb[0].mxu0 %v1589
    %v1660 = vpop.f32.mrb[0].mxu0
    %v1661 = vadd.f32 0.0, %v1660
    %v1662 = vpop.f32.mrb[0].mxu0
    %1663 = vmatprep.mubr.f32.mxu0 0.0
    %1664 = vmatmul.mubr.f32.gmra.mrb[0].mxu0 %v1592
    %v1665 = vpop.f32.mrb[0].mxu0
    %v1666 = vadd.f32 0.0, %v1665
    %v1667 = vpop.f32.mrb[0].mxu0
    %1668 = vdwg.mxu0
    %v1669 = vadd.f32 %v118, %v1661
    %v1670 = vadd.f32 %v119, %v1666
    %v1671 = vlaneseq
    %v1672 = vshrl.u32 %v1671, 7
    %v1673 = vsub.s32 0, %v1672
    %v1674 = vrot.slane %v122, %v1673
    %v1675 = vadd.f32 %v1669, %v1674
    %v1676 = vadd.f32 %v1670, %v1674
    %v1677 = vsel %vm137, %v1675, 0.0
    %1678 = vadd.xlane.f32.xlu0 %v1677
    %v1679 = vpop.xlane.xlu0 %1678
    %v1680 = vsel %vm137, %v1676, 0.0
    %1681 = vadd.xlane.f32.xlu0 %v1680
    %v1682 = vpop.xlane.xlu0 %1681
    %v1683 = vrcp.pop 32.0
    %v1684 = vmul.f32 %v1679, %v1683
    %v1685 = vmul.f32 %v1682, %v1683
    %v1686 = vsub.f32 %v1675, %v1684
    %v1687 = vsub.f32 %v1676, %v1685
    %v1688 = vmul.f32 %v1686, %v1686
    %v1689 = vmul.f32 %v1687, %v1687
    %v1690 = vsel %vm137, %v1688, 0.0
    %1691 = vadd.xlane.f32.xlu0 %v1690
    %v1692 = vpop.xlane.xlu0 %1691
    %v1693 = vsel %vm137, %v1689, 0.0
    %1694 = vadd.xlane.f32.xlu0 %v1693
    %v1695 = vpop.xlane.xlu0 %1694
    %v1696 = vmul.f32 %v1692, %v1683
    %v1697 = vmul.f32 %v1695, %v1683
    %v1698 = vadd.f32 %v1696, 1e-05
    %v1699 = vadd.f32 %v1697, 1e-05
    %v1700 = vrsqrt.pop %v1698
    %v1701 = vrsqrt.pop %v1699
    %v1702 = vmul.f32 %v1686, %v1700
    %v1703 = vmul.f32 %v1687, %v1701
    %v1704 = vlaneseq
    %v1705 = vshrl.u32 %v1704, 7
    %v1706 = vsub.s32 0, %v1705
    %v1707 = vrot.slane %v125, %v1706
    %v1708 = vmul.f32 %v1702, %v1707
    %v1709 = vmul.f32 %v1703, %v1707
    %v1710 = vlaneseq
    %v1711 = vshrl.u32 %v1710, 7
    %v1712 = vsub.s32 0, %v1711
    %v1713 = vrot.slane %v126, %v1712
    %v1714 = vadd.f32 %v1708, %v1713
    %v1715 = vadd.f32 %v1709, %v1713
    %v1716 = vld [vmem:[#allocation10] sm:$0xff]
    %v1717 = vld [vmem:[#allocation10 + $0x8] sm:$0xff]
    %v1718 = vld [vmem:[#allocation10 + $0x10] sm:$0xff]
    %v1719 = vld [vmem:[#allocation10 + $0x18] sm:$0xff]
    %v1720 = vlaneseq
    %v1721 = vshrl.u32 %v1720, 7
    %v1722 = vsub.s32 0, %v1721
    %v1723 = vrot.slane %v123, %v1722
    %v1725 = vsel %vm137, %v1714, 0
    %v1728 = vsel %vm137, %v1715, 0
    %1730 = vmatprep.subr.mxu0 0.0
    %1731 = vmatpush1.msra.mxu0 %v1716
    %1732 = vmatprep.subr.mxu0 0.0
    %1733 = vmatpush1.msra.mxu0 %v1717
    %1734 = vmatprep.subr.mxu0 0.0
    %1735 = vmatpush1.msra.mxu0 %v1718
    %1736 = vmatprep.subr.mxu0 0.0
    %1737 = vmatpush1.msra.mxu0 %v1719
    %1738 = vmatprep.subr.mxu0 0.0
    %1739 = vmatpush1.msra.mxu0 0.0
    %1740 = vmatprep.subr.mxu0 0.0
    %1741 = vmatpush1.msra.mxu0 0.0
    %1742 = vmatprep.subr.mxu0 0.0
    %1743 = vmatpush1.msra.mxu0 0.0
    %1744 = vmatprep.subr.mxu0 0.0
    %1745 = vmatpush1.msra.mxu0 0.0
    %1746 = vmatprep.subr.mxu0 0.0
    %1747 = vmatpush1.msra.mxu0 0.0
    %1748 = vmatprep.subr.mxu0 0.0
    %1749 = vmatpush1.msra.mxu0 0.0
    %1750 = vmatprep.subr.mxu0 0.0
    %1751 = vmatpush1.msra.mxu0 0.0
    %1752 = vmatprep.subr.mxu0 0.0
    %1753 = vmatpush1.msra.mxu0 0.0
    %1754 = vmatprep.subr.mxu0 0.0
    %1755 = vmatpush1.msra.mxu0 0.0
    %1756 = vmatprep.subr.mxu0 0.0
    %1757 = vmatpush1.msra.mxu0 0.0
    %1758 = vmatprep.subr.mxu0 0.0
    %1759 = vmatpush1.msra.mxu0 0.0
    %1760 = vmatprep.subr.mxu0 0.0
    %1761 = vmatpush1.msra.mxu0 0.0
    %1762 = vmatprep.subr.mxu0 0.0
    %1763 = vmatpush1.msra.mxu0 0.0
    %1764 = vmatprep.subr.mxu0 0.0
    %1765 = vmatpush1.msra.mxu0 0.0
    %1766 = vmatprep.subr.mxu0 0.0
    %1767 = vmatpush1.msra.mxu0 0.0
    %1768 = vmatprep.subr.mxu0 0.0
    %1769 = vmatpush1.msra.mxu0 0.0
    %1770 = vmatprep.subr.mxu0 0.0
    %1771 = vmatpush1.msra.mxu0 0.0
    %1772 = vmatprep.subr.mxu0 0.0
    %1773 = vmatpush1.msra.mxu0 0.0
    %1774 = vmatprep.subr.mxu0 0.0
    %1775 = vmatpush1.msra.mxu0 0.0
    %1776 = vmatprep.subr.mxu0 0.0
    %1777 = vmatpush1.msra.mxu0 0.0
    %1778 = vmatprep.subr.mxu0 0.0
    %1779 = vmatpush1.msra.mxu0 0.0
    %1780 = vmatprep.subr.mxu0 0.0
    %1781 = vmatpush1.msra.mxu0 0.0
    %1782 = vmatprep.subr.mxu0 0.0
    %1783 = vmatpush1.msra.mxu0 0.0
    %1784 = vmatprep.subr.mxu0 0.0
    %1785 = vmatpush1.msra.mxu0 0.0
    %1786 = vmatprep.subr.mxu0 0.0
    %1787 = vmatpush1.msra.mxu0 0.0
    %1788 = vmatprep.subr.mxu0 0.0
    %1789 = vmatpush1.msra.mxu0 0.0
    %1790 = vmatprep.subr.mxu0 0.0
    %1791 = vmatpush1.msra.mxu0 0.0
    %1792 = vmatprep.subr.mxu0 0.0
    %1793 = vmatpush1.msra.mxu0 0.0
    %1794 = vmatprep.mubr.f32.mxu0 0.0
    %1795 = vmatmul.mubr.f32.gmra.mrb[0].mxu0 %v1725
    %v1796 = vpop.f32.mrb[0].mxu0
    %v1797 = vadd.f32 %v1723, %v1796
    %v1798 = vpop.f32.mrb[0].mxu0
    %1799 = vmatprep.mubr.f32.mxu0 0.0
    %1800 = vmatmul.mubr.f32.gmra.mrb[0].mxu0 %v1728
    %v1801 = vpop.f32.mrb[0].mxu0
    %v1802 = vadd.f32 %v1723, %v1801
    %v1803 = vpop.f32.mrb[0].mxu0
    %1804 = vdwg.mxu0
    %v1805 = vmax.f32 %v1797, 0.0
    %v1806 = vmax.f32 %v1802, 0.0
    %v1807 = vld [vmem:[#allocation11] sm:$0xff]
    %v1808 = vld [vmem:[#allocation11 + $0x8] sm:$0xff]
    %v1809 = vld [vmem:[#allocation11 + $0x10] sm:$0xff]
    %v1810 = vld [vmem:[#allocation11 + $0x18] sm:$0xff]
    %v1811 = vld [vmem:[#allocation11 + $0x20] sm:$0xff]
    %v1812 = vld [vmem:[#allocation11 + $0x28] sm:$0xff]
    %v1813 = vld [vmem:[#allocation11 + $0x30] sm:$0xff]
    %v1814 = vld [vmem:[#allocation11 + $0x38] sm:$0xff]
    %v1815 = vlaneseq
    %v1816 = vshrl.u32 %v1815, 7
    %v1817 = vsub.s32 0, %v1816
    %v1818 = vrot.slane %v124, %v1817
    %vm1819 = vcmask 523264
    %v1821 = vsel %vm1819, %v1805, 0
    %v1824 = vsel %vm1819, %v1806, 0
    %1826 = vmatprep.subr.mxu0 0.0
    %1827 = vmatpush1.msra.mxu0 %v1807
    %1828 = vmatprep.subr.mxu0 0.0
    %1829 = vmatpush1.msra.mxu0 %v1808
    %1830 = vmatprep.subr.mxu0 0.0
    %1831 = vmatpush1.msra.mxu0 %v1809
    %1832 = vmatprep.subr.mxu0 0.0
    %1833 = vmatpush1.msra.mxu0 %v1810
    %1834 = vmatprep.subr.mxu0 0.0
    %1835 = vmatpush1.msra.mxu0 %v1811
    %1836 = vmatprep.subr.mxu0 0.0
    %1837 = vmatpush1.msra.mxu0 %v1812
    %1838 = vmatprep.subr.mxu0 0.0
    %1839 = vmatpush1.msra.mxu0 %v1813
    %1840 = vmatprep.subr.mxu0 0.0
    %1841 = vmatpush1.msra.mxu0 %v1814
    %1842 = vmatprep.subr.mxu0 0.0
    %1843 = vmatpush1.msra.mxu0 0.0
    %1844 = vmatprep.subr.mxu0 0.0
    %1845 = vmatpush1.msra.mxu0 0.0
    %1846 = vmatprep.subr.mxu0 0.0
    %1847 = vmatpush1.msra.mxu0 0.0
    %1848 = vmatprep.subr.mxu0 0.0
    %1849 = vmatpush1.msra.mxu0 0.0
    %1850 = vmatprep.subr.mxu0 0.0
    %1851 = vmatpush1.msra.mxu0 0.0
    %1852 = vmatprep.subr.mxu0 0.0
    %1853 = vmatpush1.msra.mxu0 0.0
    %1854 = vmatprep.subr.mxu0 0.0
    %1855 = vmatpush1.msra.mxu0 0.0
    %1856 = vmatprep.subr.mxu0 0.0
    %1857 = vmatpush1.msra.mxu0 0.0
    %1858 = vmatprep.subr.mxu0 0.0
    %1859 = vmatpush1.msra.mxu0 0.0
    %1860 = vmatprep.subr.mxu0 0.0
    %1861 = vmatpush1.msra.mxu0 0.0
    %1862 = vmatprep.subr.mxu0 0.0
    %1863 = vmatpush1.msra.mxu0 0.0
    %1864 = vmatprep.subr.mxu0 0.0
    %1865 = vmatpush1.msra.mxu0 0.0
    %1866 = vmatprep.subr.mxu0 0.0
    %1867 = vmatpush1.msra.mxu0 0.0
    %1868 = vmatprep.subr.mxu0 0.0
    %1869 = vmatpush1.msra.mxu0 0.0
    %1870 = vmatprep.subr.mxu0 0.0
    %1871 = vmatpush1.msra.mxu0 0.0
    %1872 = vmatprep.subr.mxu0 0.0
    %1873 = vmatpush1.msra.mxu0 0.0
    %1874 = vmatprep.subr.mxu0 0.0
    %1875 = vmatpush1.msra.mxu0 0.0
    %1876 = vmatprep.subr.mxu0 0.0
    %1877 = vmatpush1.msra.mxu0 0.0
    %1878 = vmatprep.subr.mxu0 0.0
    %1879 = vmatpush1.msra.mxu0 0.0
    %1880 = vmatprep.subr.mxu0 0.0
    %1881 = vmatpush1.msra.mxu0 0.0
    %1882 = vmatprep.subr.mxu0 0.0
    %1883 = vmatpush1.msra.mxu0 0.0
    %1884 = vmatprep.subr.mxu0 0.0
    %1885 = vmatpush1.msra.mxu0 0.0
    %1886 = vmatprep.subr.mxu0 0.0
    %1887 = vmatpush1.msra.mxu0 0.0
    %1888 = vmatprep.subr.mxu0 0.0
    %1889 = vmatpush1.msra.mxu0 0.0
    %1890 = vmatprep.mubr.f32.mxu0 0.0
    %1891 = vmatmul.mubr.f32.gmra.mrb[0].mxu0 %v1821
    %v1892 = vpop.f32.mrb[0].mxu0
    %v1893 = vadd.f32 %v1818, %v1892
    %v1894 = vpop.f32.mrb[0].mxu0
    %1895 = vmatprep.mubr.f32.mxu0 0.0
    %1896 = vmatmul.mubr.f32.gmra.mrb[0].mxu0 %v1824
    %v1897 = vpop.f32.mrb[0].mxu0
    %v1898 = vadd.f32 %v1818, %v1897
    %v1899 = vpop.f32.mrb[0].mxu0
    %1900 = vdwg.mxu0
    %v1901 = vadd.f32 %v1714, %v1893
    %v1902 = vadd.f32 %v1715, %v1898
    %v1903 = vsel %vm137, %v1901, 0.0
    %1904 = vadd.xlane.f32.xlu0 %v1903
    %v1905 = vpop.xlane.xlu0 %1904
    %v1906 = vsel %vm137, %v1902, 0.0
    %1907 = vadd.xlane.f32.xlu0 %v1906
    %v1908 = vpop.xlane.xlu0 %1907
    %v1909 = vmul.f32 %v1905, %v1683
    %v1910 = vmul.f32 %v1908, %v1683
    %v1911 = vsub.f32 %v1901, %v1909
    %v1912 = vsub.f32 %v1902, %v1910
    %v1913 = vmul.f32 %v1911, %v1911
    %v1914 = vmul.f32 %v1912, %v1912
    %v1915 = vsel %vm137, %v1913, 0.0
    %1916 = vadd.xlane.f32.xlu0 %v1915
    %v1917 = vpop.xlane.xlu0 %1916
    %v1918 = vsel %vm137, %v1914, 0.0
    %1919 = vadd.xlane.f32.xlu0 %v1918
    %v1920 = vpop.xlane.xlu0 %1919
    %v1921 = vmul.f32 %v1917, %v1683
    %v1922 = vmul.f32 %v1920, %v1683
    %v1923 = vadd.f32 %v1921, 1e-05
    %v1924 = vadd.f32 %v1922, 1e-05
    %v1925 = vrsqrt.pop %v1923
    %v1926 = vrsqrt.pop %v1924
    %v1927 = vmul.f32 %v1911, %v1925
    %v1928 = vmul.f32 %v1912, %v1926
    %v1929 = vlaneseq
    %v1930 = vshrl.u32 %v1929, 7
    %v1931 = vsub.s32 0, %v1930
    %v1932 = vrot.slane %v127, %v1931
    %v1933 = vmul.f32 %v1927, %v1932
    %v1934 = vmul.f32 %v1928, %v1932
    %v1935 = vlaneseq
    %v1936 = vshrl.u32 %v1935, 7
    %v1937 = vsub.s32 0, %v1936
    %v1938 = vrot.slane %v128, %v1937
    %v1939 = vadd.f32 %v1933, %v1938
    %v1940 = vadd.f32 %v1934, %v1938
    %1941 = vst.msk [vmem:[#allocation14] sm:$0xff] %vm137, %v1939
    %1942 = vst.msk [vmem:[#allocation14 + $0x8] sm:$0xff] %vm137, %v1940
    // Predicated region
    $region58: #{tpu_custom_call.1} parent=1 // pred_check
      _
    $region59: #{tpu_custom_call.1} parent=1 // pred_check_branch
      %1944 = sbr.rel (0) target = $region61
    $region60: #{tpu_custom_call.1} parent=1 // pred_region
      %s1946 = ssub.s32 256, 256
      %1947 = vsyncadd [#allocation4], %s1946
      %s1948 = sshll.u32 [#allocation14], 4
      %s1949 = int_to_ptr.vmem [resolvable:$true] %s1948
      %1954 = dma.vmem_to_hbm [thread:$0]  %s1949, 256, %s7, [#allocation4], 128, 128, 8
    $region61: #{tpu_custom_call.1} parent=1 // pred_fallthru
      _
    // Predicated region
    $region62: #{tpu_custom_call.1} parent=1 // pred_check
      _
    $region63: #{tpu_custom_call.1} parent=1 // pred_check_branch
      %1956 = sbr.rel (0) target = $region65
    $region64: #{tpu_custom_call.1} parent=1 // pred_region
      %1957 = dma.done [#allocation4], 256
    $region65: #{tpu_custom_call.1} parent=1 // pred_fallthru
      _
    %1958 = vsyncpa [#allocation3], 1
    %1959 = vsyncpa [#allocation6], 1
    %1960 = vsyncpa [#allocation9], 1
    %1961 = vsyncpa [#allocation12], 1
    %1962 = vsyncpa [#allocation4], 1

</llo_original>
